<compile_context>
chip_gen: v6e
topology: v6e:2x2x1
jax: 0.10.0
libtpu: 0.0.40
codegen_flags: <defaults>
</compile_context>

<pallas_src>
import functools

import jax
import jax.numpy as jnp
from jax import lax
from jax.experimental import pallas as pl
from jax.experimental.pallas import tpu as pltpu

EPS = 1e-5     # BatchNorm2d default eps
LANE = 128     # TPU lane width


def _round_up(x, m):
    return (x + m - 1) // m * m


def _conv_relu_stats_kernel(x_ref, w_ref, b_ref, y_ref, stats_ref):
    """Pass 1: 3x3 conv + bias + ReLU for one batch block, plus BN partial sums.

    x_ref:     (1, H+2, W+2, Cin_p)  zero-padded NHWC input block (bf16)
    w_ref:     (9*Cin_p, Cout_p)     im2col-flattened weights (bf16), resident
    b_ref:     (1, Cout_p)           conv bias (f32)
    y_ref:     (1, H*W, Cout_p)      conv+bias+ReLU output (f32)
    stats_ref: (1, 2, Cout_p)        per-block [sum, sum_of_squares] (f32)
    """
    _, Hp, Wp, Cin_p = x_ref.shape
    H, W = Hp - 2, Wp - 2

    x = x_ref[0]                                            # (Hp, Wp, Cin_p) bf16

    # im2col patch: 9 shifted taps concatenated along the contraction axis.
    # Tap lane offsets are multiples of 128 (Cin_p is lane-padded) -> aligned.
    taps = []
    for dy in range(3):
        for dx in range(3):
            taps.append(x[dy:dy + H, dx:dx + W, :].reshape(H * W, Cin_p))
    patch = jnp.concatenate(taps, axis=-1)                  # (H*W, 9*Cin_p) bf16

    # Single MXU matmul, f32 accumulation.
    acc = jnp.dot(patch, w_ref[...], preferred_element_type=jnp.float32)
    acc = jnp.maximum(acc + b_ref[...], 0.0)                # bias + ReLU (f32)

    y_ref[0] = acc                                          # lane-dense store

    # BN partial statistics in the same pass (no extra sweep over acc later).
    s1 = jnp.sum(acc, axis=0, keepdims=True)                # (1, Cout_p)
    s2 = jnp.sum(acc * acc, axis=0, keepdims=True)          # (1, Cout_p)
    stats_ref[0] = jnp.concatenate([s1, s2], axis=0)        # (2, Cout_p)


def _bn_apply_kernel(stats_ref, gamma_ref, beta_ref, y_ref, o_ref, *, count):
    """Pass 2: reduce partial stats to per-channel scale/shift and apply.

    stats_ref:      (Nb, 2, Cout_p)  all partial sums (tiny, fully resident)
    gamma/beta_ref: (1, Cout_p)
    y_ref / o_ref:  (1, rows, Cout_p)
    """
    s = jnp.sum(stats_ref[...], axis=0)                     # (2, Cout_p)
    inv_n = 1.0 / count
    mean = s[0:1, :] * inv_n                                # (1, Cout_p)
    var = jnp.maximum(s[1:2, :] * inv_n - mean * mean, 0.0) # biased variance
    inv_std = lax.rsqrt(var + EPS)                          # EUP
    scale = gamma_ref[...] * inv_std
    shift = beta_ref[...] - mean * scale
    o_ref[0] = y_ref[0] * scale + shift


@jax.jit
def conv_forward(x_nchw, w_oihw, bias, gamma, beta):
    """Forward of `Conv`: Conv2d(3x3, s=1, p=1) -> ReLU -> BatchNorm2d (training)."""
    N, Cin, H, W = x_nchw.shape
    Cout = w_oihw.shape[0]
    Cin_p = _round_up(Cin, LANE)
    Cout_p = _round_up(Cout, LANE)
    Hp, Wp = H + 2, W + 2
    rows = H * W

    # ---- layout plumbing (fused XLA producers): NCHW->NHWC, halo + lane pad,
    # bf16 cast for the MXU feed. ----
    x_nhwc = jnp.transpose(x_nchw, (0, 2, 3, 1))
    x_pad = jnp.pad(
        x_nhwc, ((0, 0), (1, 1), (1, 1), (0, Cin_p - Cin))).astype(jnp.bfloat16)

    w_hwio = jnp.transpose(w_oihw, (2, 3, 1, 0))                     # (3,3,Cin,Cout)
    w_pad = jnp.pad(w_hwio, ((0, 0), (0, 0), (0, Cin_p - Cin), (0, Cout_p - Cout)))
    w2 = w_pad.reshape(9 * Cin_p, Cout_p).astype(jnp.bfloat16)

    b2 = jnp.pad(bias, (0, Cout_p - Cout)).reshape(1, Cout_p).astype(jnp.float32)
    g2 = jnp.pad(gamma, (0, Cout_p - Cout)).reshape(1, Cout_p).astype(jnp.float32)
    be2 = jnp.pad(beta, (0, Cout_p - Cout)).reshape(1, Cout_p).astype(jnp.float32)

    cparams = pltpu.CompilerParams(
        dimension_semantics=("parallel",),        # both TCs on v7x
        vmem_limit_bytes=32 * 1024 * 1024,        # safe on v5e/v6e/v7x
    )

    # ---- pass 1: conv + bias + ReLU + BN partial sums (pipelined over N) ----
    flops1 = 2 * N * rows * (9 * Cin_p) * Cout_p
    bytes1 = (x_pad.size * 2 + w2.size * 2 + b2.size * 4
              + N * rows * Cout_p * 4 + N * 2 * Cout_p * 4)
    y, stats = pl.pallas_call(
        _conv_relu_stats_kernel,
        grid=(N,),
        in_specs=[
            pl.BlockSpec((1, Hp, Wp, Cin_p), lambda n: (n, 0, 0, 0)),
            pl.BlockSpec((9 * Cin_p, Cout_p), lambda n: (0, 0)),   # resident
            pl.BlockSpec((1, Cout_p), lambda n: (0, 0)),           # resident
        ],
        out_specs=[
            pl.BlockSpec((1, rows, Cout_p), lambda n: (n, 0, 0)),
            pl.BlockSpec((1, 2, Cout_p), lambda n: (n, 0, 0)),
        ],
        out_shape=(
            jax.ShapeDtypeStruct((N, rows, Cout_p), jnp.float32),
            jax.ShapeDtypeStruct((N, 2, Cout_p), jnp.float32),
        ),
        compiler_params=cparams,
        cost_estimate=pl.CostEstimate(
            flops=flops1, transcendentals=0, bytes_accessed=bytes1),
    )(x_pad, w2, b2)

    # ---- pass 2: normalize (per-channel scale/shift), pipelined over N ----
    flops2 = 4 * N * rows * Cout_p
    bytes2 = 2 * N * rows * Cout_p * 4 + (N * 2 + 2) * Cout_p * 4
    o = pl.pallas_call(
        functools.partial(_bn_apply_kernel, count=float(N * rows)),
        grid=(N,),
        in_specs=[
            pl.BlockSpec((N, 2, Cout_p), lambda n: (0, 0, 0)),     # resident
            pl.BlockSpec((1, Cout_p), lambda n: (0, 0)),
            pl.BlockSpec((1, Cout_p), lambda n: (0, 0)),
            pl.BlockSpec((1, rows, Cout_p), lambda n: (n, 0, 0)),
        ],
        out_specs=pl.BlockSpec((1, rows, Cout_p), lambda n: (n, 0, 0)),
        out_shape=jax.ShapeDtypeStruct((N, rows, Cout_p), jnp.float32),
        compiler_params=cparams,
        cost_estimate=pl.CostEstimate(
            flops=flops2, transcendentals=N * Cout_p, bytes_accessed=bytes2),
    )(stats, g2, be2, y)

    # back to PyTorch NCHW, drop lane padding (layout plumbing)
    out_nhwc = o.reshape(N, H, W, Cout_p)[:, :, :, :Cout]
    return jnp.transpose(out_nhwc, (0, 3, 1, 2))


def _reference(x_nchw, w_oihw, bias, gamma, beta, matmul_dtype=jnp.float32):
    """Pure-JAX reference matching PyTorch semantics (conv dtype selectable)."""
    y = lax.conv_general_dilated(
        x_nchw.astype(matmul_dtype), w_oihw.astype(matmul_dtype),
        window_strides=(1, 1), padding=((1, 1), (1, 1)),
        dimension_numbers=("NCHW", "OIHW", "NCHW"),
        preferred_element_type=jnp.float32,
    ) + bias.reshape(1, -1, 1, 1)
    y = jnp.maximum(y, 0.0)
    mean = jnp.mean(y, axis=(0, 2, 3), keepdims=True)
    var = jnp.mean((y - mean) ** 2, axis=(0, 2, 3), keepdims=True)
    return (y - mean) / jnp.sqrt(var + EPS) * gamma.reshape(1, -1, 1, 1) \
        + beta.reshape(1, -1, 1, 1)


if __name__ == "__main__":
    N, Cin, Cout, H, W = 2, 4, 8, 16, 16

    key = jax.random.PRNGKey(0)
    kx, kw, kb = jax.random.split(key, 3)
    x = jax.random.normal(kx, (N, Cin, H, W), dtype=jnp.float32)
    # deterministic synthetic parameters (Conv2d weight/bias; BN defaults 1/0)
    w = jax.random.normal(kw, (Cout, Cin, 3, 3), dtype=jnp.float32) * 0.1
    b = jax.random.normal(kb, (Cout,), dtype=jnp.float32) * 0.1
    gamma = jnp.ones((Cout,), dtype=jnp.float32)
    beta = jnp.zeros((Cout,), dtype=jnp.float32)

    out = jax.block_until_ready(conv_forward(x, w, b, gamma, beta))
    ref_bf16 = jax.block_until_ready(_reference(x, w, b, gamma, beta, jnp.bfloat16))
    ref_f32 = jax.block_until_ready(_reference(x, w, b, gamma, beta, jnp.float32))

    assert out.shape == (N, Cout, H, W)
    # Tight check against a reference using the same bf16 MXU input precision.
    assert jnp.allclose(out, ref_bf16, atol=5e-3, rtol=5e-3)
    # Looser fidelity check against the pure-f32 (PyTorch-style) reference; the
    # gap is the deliberate bf16 cast of the matmul inputs (perf review).
    assert jnp.allclose(out, ref_f32, atol=5e-2, rtol=5e-2)
    print("KERNEL_OK")
</pallas_src>

<mosaic_0001>
module attributes {stable_mosaic.version = 11 : i64} {
  func.func @_bn_apply_kernel(%arg0: i32, %arg1: memref<2x2x128xf32, #tpu.memory_space<vmem>>, %arg2: memref<1x128xf32, #tpu.memory_space<vmem>>, %arg3: memref<1x128xf32, #tpu.memory_space<vmem>>, %arg4: memref<1x256x128xf32, #tpu.memory_space<vmem>>, %arg5: memref<1x256x128xf32, #tpu.memory_space<vmem>>) attributes {dimension_semantics = [#tpu.dimension_semantics<parallel>], iteration_bounds = array<i64: 2>, scalar_prefetch = 0 : i64, scratch_operands = 0 : i64, tpu.core_type = #tpu.core_type<tc>, window_params = [{pipeline_mode = #tpu.pipeline_mode<synchronous>, transform_indices = @transform_0, window_bounds = array<i64: 2, 2, 128>}, {pipeline_mode = #tpu.pipeline_mode<synchronous>, transform_indices = @transform_1, window_bounds = array<i64: 1, 128>}, {pipeline_mode = #tpu.pipeline_mode<synchronous>, transform_indices = @transform_2, window_bounds = array<i64: 1, 128>}, {transform_indices = @transform_3, window_bounds = array<i64: 1, 256, 128>}, {transform_indices = @transform_4, window_bounds = array<i64: 1, 256, 128>}]} {
    %c0 = arith.constant 0 : index
    %c0_0 = arith.constant 0 : index
    %c0_1 = arith.constant 0 : index
    %0 = vector.load %arg1[%c0, %c0_0, %c0_1] : memref<2x2x128xf32, #tpu.memory_space<vmem>>, vector<2x2x128xf32>
    %cst = arith.constant dense<0.000000e+00> : vector<2x128xf32>
    %1 = vector.multi_reduction <add>, %0, %cst [0] : vector<2x2x128xf32> to vector<2x128xf32>
    %2 = vector.extract_strided_slice %1 {offsets = [0, 0], sizes = [1, 128], strides = [1, 1]} : vector<2x128xf32> to vector<1x128xf32>
    %cst_2 = arith.constant 0.001953125 : f32
    %3 = vector.broadcast %cst_2 : f32 to vector<1x128xf32>
    %4 = arith.mulf %2, %3 : vector<1x128xf32>
    %5 = vector.extract_strided_slice %1 {offsets = [1, 0], sizes = [1, 128], strides = [1, 1]} : vector<2x128xf32> to vector<1x128xf32>
    %cst_3 = arith.constant 0.001953125 : f32
    %6 = vector.broadcast %cst_3 : f32 to vector<1x128xf32>
    %7 = arith.mulf %5, %6 : vector<1x128xf32>
    %8 = arith.mulf %4, %4 : vector<1x128xf32>
    %9 = arith.subf %7, %8 : vector<1x128xf32>
    %cst_4 = arith.constant 0.000000e+00 : f32
    %10 = vector.broadcast %cst_4 : f32 to vector<1x128xf32>
    %11 = arith.maximumf %9, %10 : vector<1x128xf32>
    %cst_5 = arith.constant 9.99999974E-6 : f32
    %12 = vector.broadcast %cst_5 : f32 to vector<1x128xf32>
    %13 = arith.addf %11, %12 : vector<1x128xf32>
    %14 = math.rsqrt %13 : vector<1x128xf32>
    %c0_6 = arith.constant 0 : index
    %c0_7 = arith.constant 0 : index
    %15 = vector.load %arg2[%c0_6, %c0_7] : memref<1x128xf32, #tpu.memory_space<vmem>>, vector<1x128xf32>
    %16 = arith.mulf %15, %14 : vector<1x128xf32>
    %c0_8 = arith.constant 0 : index
    %c0_9 = arith.constant 0 : index
    %17 = vector.load %arg3[%c0_8, %c0_9] : memref<1x128xf32, #tpu.memory_space<vmem>>, vector<1x128xf32>
    %18 = arith.mulf %4, %16 : vector<1x128xf32>
    %19 = arith.subf %17, %18 : vector<1x128xf32>
    %c0_10 = arith.constant 0 : index
    %c0_11 = arith.constant 0 : index
    %c0_12 = arith.constant 0 : index
    %20 = vector.load %arg4[%c0_10, %c0_11, %c0_12] : memref<1x256x128xf32, #tpu.memory_space<vmem>>, vector<1x256x128xf32>
    %21 = vector.shape_cast %20 : vector<1x256x128xf32> to vector<256x128xf32>
    %22 = vector.broadcast %16 : vector<1x128xf32> to vector<256x128xf32>
    %23 = arith.mulf %21, %22 : vector<256x128xf32>
    %24 = vector.broadcast %19 : vector<1x128xf32> to vector<256x128xf32>
    %25 = arith.addf %23, %24 : vector<256x128xf32>
    %c0_13 = arith.constant 0 : index
    %c0_14 = arith.constant 0 : index
    %c0_15 = arith.constant 0 : index
    %26 = vector.load %arg5[%c0_13, %c0_14, %c0_15] : memref<1x256x128xf32, #tpu.memory_space<vmem>>, vector<1x256x128xf32>
    %27 = vector.shape_cast %26 : vector<1x256x128xf32> to vector<256x128xf32>
    %28 = vector.shape_cast %25 : vector<256x128xf32> to vector<1x256x128xf32>
    tpu.vector_store %arg5[%c0_13, %c0_14, %c0_15], %28 {strides = array<i32>} : memref<1x256x128xf32, #tpu.memory_space<vmem>>, vector<1x256x128xf32>,
    return
  }
  func.func @transform_0(%arg0: i32) -> (i32, i32, i32) {
    %c0_i32 = arith.constant 0 : i32
    %c0_i32_0 = arith.constant 0 : i32
    %c0_i32_1 = arith.constant 0 : i32
    %c0_i32_2 = arith.constant 0 : i32
    return %c0_i32, %c0_i32_0, %c0_i32_1 : i32, i32, i32
  }
  func.func @transform_1(%arg0: i32) -> (i32, i32) {
    %c0_i32 = arith.constant 0 : i32
    %c0_i32_0 = arith.constant 0 : i32
    %c0_i32_1 = arith.constant 0 : i32
    return %c0_i32, %c0_i32_0 : i32, i32
  }
  func.func @transform_2(%arg0: i32) -> (i32, i32) {
    %c0_i32 = arith.constant 0 : i32
    %c0_i32_0 = arith.constant 0 : i32
    %c0_i32_1 = arith.constant 0 : i32
    return %c0_i32, %c0_i32_0 : i32, i32
  }
  func.func @transform_3(%arg0: i32) -> (i32, i32, i32) {
    %c0_i32 = arith.constant 0 : i32
    %c0_i32_0 = arith.constant 0 : i32
    %c0_i32_1 = arith.constant 0 : i32
    return %arg0, %c0_i32, %c0_i32_0 : i32, i32, i32
  }
  func.func @transform_4(%arg0: i32) -> (i32, i32, i32) {
    %c0_i32 = arith.constant 0 : i32
    %c0_i32_0 = arith.constant 0 : i32
    %c0_i32_1 = arith.constant 0 : i32
    return %arg0, %c0_i32, %c0_i32_0 : i32, i32, i32
  }
}

module attributes {stable_mosaic.version = 11 : i64} {
  func.func @_conv_relu_stats_kernel(%arg0: i32, %arg1: memref<1x18x18x128xbf16, #tpu.memory_space<vmem>>, %arg2: memref<1152x128xbf16, #tpu.memory_space<vmem>>, %arg3: memref<1x128xf32, #tpu.memory_space<vmem>>, %arg4: memref<1x256x128xf32, #tpu.memory_space<vmem>>, %arg5: memref<1x2x128xf32, #tpu.memory_space<vmem>>) attributes {dimension_semantics = [#tpu.dimension_semantics<parallel>], iteration_bounds = array<i64: 2>, scalar_prefetch = 0 : i64, scratch_operands = 0 : i64, tpu.core_type = #tpu.core_type<tc>, window_params = [{transform_indices = @transform_0, window_bounds = array<i64: 1, 18, 18, 128>}, {pipeline_mode = #tpu.pipeline_mode<synchronous>, transform_indices = @transform_1, window_bounds = array<i64: 1152, 128>}, {pipeline_mode = #tpu.pipeline_mode<synchronous>, transform_indices = @transform_2, window_bounds = array<i64: 1, 128>}, {transform_indices = @transform_3, window_bounds = array<i64: 1, 256, 128>}, {transform_indices = @transform_4, window_bounds = array<i64: 1, 2, 128>}]} {
    %c0 = arith.constant 0 : index
    %c0_0 = arith.constant 0 : index
    %c0_1 = arith.constant 0 : index
    %c0_2 = arith.constant 0 : index
    %0 = vector.load %arg1[%c0, %c0_0, %c0_1, %c0_2] : memref<1x18x18x128xbf16, #tpu.memory_space<vmem>>, vector<1x18x18x128xbf16>
    %1 = vector.shape_cast %0 : vector<1x18x18x128xbf16> to vector<18x18x128xbf16>
    %2 = vector.extract_strided_slice %1 {offsets = [0, 0, 0], sizes = [16, 16, 128], strides = [1, 1, 1]} : vector<18x18x128xbf16> to vector<16x16x128xbf16>
    %3 = vector.shape_cast %2 : vector<16x16x128xbf16> to vector<256x128xbf16>
    %4 = vector.extract_strided_slice %1 {offsets = [0, 1, 0], sizes = [16, 16, 128], strides = [1, 1, 1]} : vector<18x18x128xbf16> to vector<16x16x128xbf16>
    %5 = vector.shape_cast %4 : vector<16x16x128xbf16> to vector<256x128xbf16>
    %6 = vector.extract_strided_slice %1 {offsets = [0, 2, 0], sizes = [16, 16, 128], strides = [1, 1, 1]} : vector<18x18x128xbf16> to vector<16x16x128xbf16>
    %7 = vector.shape_cast %6 : vector<16x16x128xbf16> to vector<256x128xbf16>
    %8 = vector.extract_strided_slice %1 {offsets = [1, 0, 0], sizes = [16, 16, 128], strides = [1, 1, 1]} : vector<18x18x128xbf16> to vector<16x16x128xbf16>
    %9 = vector.shape_cast %8 : vector<16x16x128xbf16> to vector<256x128xbf16>
    %10 = vector.extract_strided_slice %1 {offsets = [1, 1, 0], sizes = [16, 16, 128], strides = [1, 1, 1]} : vector<18x18x128xbf16> to vector<16x16x128xbf16>
    %11 = vector.shape_cast %10 : vector<16x16x128xbf16> to vector<256x128xbf16>
    %12 = vector.extract_strided_slice %1 {offsets = [1, 2, 0], sizes = [16, 16, 128], strides = [1, 1, 1]} : vector<18x18x128xbf16> to vector<16x16x128xbf16>
    %13 = vector.shape_cast %12 : vector<16x16x128xbf16> to vector<256x128xbf16>
    %14 = vector.extract_strided_slice %1 {offsets = [2, 0, 0], sizes = [16, 16, 128], strides = [1, 1, 1]} : vector<18x18x128xbf16> to vector<16x16x128xbf16>
    %15 = vector.shape_cast %14 : vector<16x16x128xbf16> to vector<256x128xbf16>
    %16 = vector.extract_strided_slice %1 {offsets = [2, 1, 0], sizes = [16, 16, 128], strides = [1, 1, 1]} : vector<18x18x128xbf16> to vector<16x16x128xbf16>
    %17 = vector.shape_cast %16 : vector<16x16x128xbf16> to vector<256x128xbf16>
    %18 = vector.extract_strided_slice %1 {offsets = [2, 2, 0], sizes = [16, 16, 128], strides = [1, 1, 1]} : vector<18x18x128xbf16> to vector<16x16x128xbf16>
    %19 = vector.shape_cast %18 : vector<16x16x128xbf16> to vector<256x128xbf16>
    %20 = tpu.concatenate %3, %5, %7, %9, %11, %13, %15, %17, %19 in 1 : vector<256x128xbf16>, vector<256x128xbf16>, vector<256x128xbf16>, vector<256x128xbf16>, vector<256x128xbf16>, vector<256x128xbf16>, vector<256x128xbf16>, vector<256x128xbf16>, vector<256x128xbf16> -> vector<256x1152xbf16>
    %c0_3 = arith.constant 0 : index
    %c0_4 = arith.constant 0 : index
    %21 = vector.load %arg2[%c0_3, %c0_4] : memref<1152x128xbf16, #tpu.memory_space<vmem>>, vector<1152x128xbf16>
    %cst = arith.constant dense<0.000000e+00> : vector<256x128xf32>
    %22 = tpu.matmul %20, %21, %cst {dimension_numbers = #tpu.dot_dimension_numbers<[1], [0], [0], [1], [0, 0, 1, 1], [], []>} : vector<256x1152xbf16>, vector<1152x128xbf16>, vector<256x128xf32> -> vector<256x128xf32>
    %c0_5 = arith.constant 0 : index
    %c0_6 = arith.constant 0 : index
    %23 = vector.load %arg3[%c0_5, %c0_6] : memref<1x128xf32, #tpu.memory_space<vmem>>, vector<1x128xf32>
    %24 = vector.broadcast %23 : vector<1x128xf32> to vector<256x128xf32>
    %25 = arith.addf %22, %24 : vector<256x128xf32>
    %cst_7 = arith.constant 0.000000e+00 : f32
    %26 = vector.broadcast %cst_7 : f32 to vector<256x128xf32>
    %27 = arith.maximumf %25, %26 : vector<256x128xf32>
    %c0_8 = arith.constant 0 : index
    %c0_9 = arith.constant 0 : index
    %c0_10 = arith.constant 0 : index
    %28 = vector.load %arg4[%c0_8, %c0_9, %c0_10] : memref<1x256x128xf32, #tpu.memory_space<vmem>>, vector<1x256x128xf32>
    %29 = vector.shape_cast %28 : vector<1x256x128xf32> to vector<256x128xf32>
    %30 = vector.shape_cast %27 : vector<256x128xf32> to vector<1x256x128xf32>
    tpu.vector_store %arg4[%c0_8, %c0_9, %c0_10], %30 {strides = array<i32>} : memref<1x256x128xf32, #tpu.memory_space<vmem>>, vector<1x256x128xf32>,
    %cst_11 = arith.constant dense<0.000000e+00> : vector<128xf32>
    %31 = vector.multi_reduction <add>, %27, %cst_11 [0] : vector<256x128xf32> to vector<128xf32>
    %32 = vector.shape_cast %31 : vector<128xf32> to vector<1x128xf32>
    %33 = arith.mulf %27, %27 : vector<256x128xf32>
    %cst_12 = arith.constant dense<0.000000e+00> : vector<128xf32>
    %34 = vector.multi_reduction <add>, %33, %cst_12 [0] : vector<256x128xf32> to vector<128xf32>
    %35 = vector.shape_cast %34 : vector<128xf32> to vector<1x128xf32>
    %36 = tpu.concatenate %32, %35 in 0 : vector<1x128xf32>, vector<1x128xf32> -> vector<2x128xf32>
    %c0_13 = arith.constant 0 : index
    %c0_14 = arith.constant 0 : index
    %c0_15 = arith.constant 0 : index
    %37 = vector.load %arg5[%c0_13, %c0_14, %c0_15] : memref<1x2x128xf32, #tpu.memory_space<vmem>>, vector<1x2x128xf32>
    %38 = vector.shape_cast %37 : vector<1x2x128xf32> to vector<2x128xf32>
    %39 = vector.shape_cast %36 : vector<2x128xf32> to vector<1x2x128xf32>
    tpu.vector_store %arg5[%c0_13, %c0_14, %c0_15], %39 {strides = array<i32>} : memref<1x2x128xf32, #tpu.memory_space<vmem>>, vector<1x2x128xf32>,
    return
  }
  func.func @transform_0(%arg0: i32) -> (i32, i32, i32, i32) {
    %c0_i32 = arith.constant 0 : i32
    %c0_i32_0 = arith.constant 0 : i32
    %c0_i32_1 = arith.constant 0 : i32
    %c0_i32_2 = arith.constant 0 : i32
    return %arg0, %c0_i32, %c0_i32_0, %c0_i32_1 : i32, i32, i32, i32
  }
  func.func @transform_1(%arg0: i32) -> (i32, i32) {
    %c0_i32 = arith.constant 0 : i32
    %c0_i32_0 = arith.constant 0 : i32
    %c0_i32_1 = arith.constant 0 : i32
    return %c0_i32, %c0_i32_0 : i32, i32
  }
  func.func @transform_2(%arg0: i32) -> (i32, i32) {
    %c0_i32 = arith.constant 0 : i32
    %c0_i32_0 = arith.constant 0 : i32
    %c0_i32_1 = arith.constant 0 : i32
    return %c0_i32, %c0_i32_0 : i32, i32
  }
  func.func @transform_3(%arg0: i32) -> (i32, i32, i32) {
    %c0_i32 = arith.constant 0 : i32
    %c0_i32_0 = arith.constant 0 : i32
    %c0_i32_1 = arith.constant 0 : i32
    return %arg0, %c0_i32, %c0_i32_0 : i32, i32, i32
  }
  func.func @transform_4(%arg0: i32) -> (i32, i32, i32) {
    %c0_i32 = arith.constant 0 : i32
    %c0_i32_0 = arith.constant 0 : i32
    %c0_i32_1 = arith.constant 0 : i32
    return %arg0, %c0_i32, %c0_i32_0 : i32, i32, i32
  }
}

</mosaic_0001>

<llo_original>
// kernel: conv_forward.3
$region0: #{conv_forward.3}
  #allocation0 [shape = 'u32[]', space=smem, size = 0x4, offset = 0x4, fixed_abs, tag = 'smem constant byte address 0x4 - core index']
  #allocation1 [shape = 'u32[144,128]{1,0:T(1,128)}', space=vmem, size = 0x12000, scoped, tag = 'internal scratch']
  %s0 = inlined_call_operand.vmem [shape: f32[2,2,128], index: 0, kind: input, shape index: {}]
  %s1 = inlined_call_operand.vmem [shape: f32[1,128], index: 1, kind: input, shape index: {}]
  %s2 = inlined_call_operand.vmem [shape: f32[1,128], index: 2, kind: input, shape index: {}]
  %s3 = inlined_call_operand.vmem [shape: f32[2,256,128], index: 3, kind: input, shape index: {}]
  %s4 = inlined_call_operand.vmem [shape: f32[2,256,128], index: 4, kind: output, shape index: {}]
  %s5 = sld [smem:[#allocation0]]
  $region49: #{conv_forward.3} parent=0
    _
  %s7 = ssub.s32 1, %s5
  %s8 = scalar_select 0, %s7, %s5
  loop: start=0, step=1, limit=4
  $region2: #{conv_forward.3} parent=0 // loop_pre_header
    _
  $region3: #{conv_forward.3} parent=0 // loop_header
    %s10 = sphi 0, %s14
    %p11 = scmp.ge.s32.totalorder %s10, 4
    %s18 = sphi 0, %s18
    %s20 = sphi 0, %s18
    %s21 = sphi 0, %s20
    %s35 = sphi 0, %s21
    %s39 = sphi 0, %s39
    %s41 = sphi 0, %s39
    %s42 = sphi 0, %s41
    %s56 = sphi 0, %s42
    %s60 = sphi 0, %s60
    %s62 = sphi 0, %s60
    %s63 = sphi 0, %s62
    %s77 = sphi 0, %s63
    %s83 = sphi 0, %s85
    %s86 = sphi 0, %s83
    %s87 = sphi 0, %s86
    %s103 = sphi 0, %s87
    %s109 = sphi 0, %s111
    %s112 = sphi 0, %s109
    %s113 = sphi 0, %s112
    %s129 = sphi 0, %s113
  $region4: #{conv_forward.3} parent=0 // loop_header_branch
    %13 = sbr.rel (%p11) target = $region8
  $region5: #{conv_forward.3} parent=0 // loop_body
    %s15 = ssub.s32 %s10, 1
    %s16 = ssub.s32 %s10, 2
    %s17 = sadd.s32 %s10, 1
    %s19 = sadd.s32 %s18, 1
    %p22 = scmp.eq.s32.totalorder %s10, 1
    %p23 = scmp.ne.s32.totalorder %s18, %s20
    %p24 = scmp.eq.s32.totalorder %s10, 0
    %p25 = por %p23, %p24
    %p26 = scmp.ne.s32.totalorder %s18, %s20
    %p27 = scmp.eq.s32.totalorder %s15, 1
    %p28 = por %p26, %p27
    %p29 = scmp.ne.s32.totalorder %s20, %s21
    %p30 = scmp.eq.s32.totalorder %s15, 0
    %p31 = por %p29, %p30
    %p32 = scmp.ne.s32.totalorder %s20, %s21
    %p33 = scmp.eq.s32.totalorder %s16, 1
    %p34 = por %p32, %p33
    %p36 = scmp.ne.s32.totalorder %s21, %s35
    %p37 = scmp.eq.s32.totalorder %s16, 0
    %p38 = por %p36, %p37
    %s40 = sadd.s32 %s39, 1
    %p43 = scmp.eq.s32.totalorder %s10, 1
    %p44 = scmp.ne.s32.totalorder %s39, %s41
    %p45 = scmp.eq.s32.totalorder %s10, 0
    %p46 = por %p44, %p45
    %p47 = scmp.ne.s32.totalorder %s39, %s41
    %p48 = scmp.eq.s32.totalorder %s15, 1
    %p49 = por %p47, %p48
    %p50 = scmp.ne.s32.totalorder %s41, %s42
    %p51 = scmp.eq.s32.totalorder %s15, 0
    %p52 = por %p50, %p51
    %p53 = scmp.ne.s32.totalorder %s41, %s42
    %p54 = scmp.eq.s32.totalorder %s16, 1
    %p55 = por %p53, %p54
    %p57 = scmp.ne.s32.totalorder %s42, %s56
    %p58 = scmp.eq.s32.totalorder %s16, 0
    %p59 = por %p57, %p58
    %s61 = sadd.s32 %s60, 1
    %p64 = scmp.eq.s32.totalorder %s10, 1
    %p65 = scmp.ne.s32.totalorder %s60, %s62
    %p66 = scmp.eq.s32.totalorder %s10, 0
    %p67 = por %p65, %p66
    %p68 = scmp.ne.s32.totalorder %s60, %s62
    %p69 = scmp.eq.s32.totalorder %s15, 1
    %p70 = por %p68, %p69
    %p71 = scmp.ne.s32.totalorder %s62, %s63
    %p72 = scmp.eq.s32.totalorder %s15, 0
    %p73 = por %p71, %p72
    %p74 = scmp.ne.s32.totalorder %s62, %s63
    %p75 = scmp.eq.s32.totalorder %s16, 1
    %p76 = por %p74, %p75
    %p78 = scmp.ne.s32.totalorder %s63, %s77
    %p79 = scmp.eq.s32.totalorder %s16, 0
    %p80 = por %p78, %p79
    %s81 = ssub.s32 %s10, %s17
    %p82 = scmp.eq.s32.totalorder %s81, 0
    %s84 = sadd.s32 %s83, 1
    %s85 = scalar_select %p82, %s83, %s84
    %p88 = pneg %p82
    %p89 = scmp.eq.s32.totalorder %s10, 1
    %p90 = por %p88, %p89
    %p91 = scmp.ne.s32.totalorder %s83, %s86
    %p92 = scmp.eq.s32.totalorder %s10, 0
    %p93 = por %p91, %p92
    %p94 = scmp.ne.s32.totalorder %s83, %s86
    %p95 = scmp.eq.s32.totalorder %s15, 1
    %p96 = por %p94, %p95
    %p97 = scmp.ne.s32.totalorder %s86, %s87
    %p98 = scmp.eq.s32.totalorder %s15, 0
    %p99 = por %p97, %p98
    %p100 = scmp.ne.s32.totalorder %s86, %s87
    %p101 = scmp.eq.s32.totalorder %s16, 1
    %p102 = por %p100, %p101
    %p104 = scmp.ne.s32.totalorder %s87, %s103
    %p105 = scmp.eq.s32.totalorder %s16, 0
    %p106 = por %p104, %p105
    %s107 = ssub.s32 %s10, %s17
    %p108 = scmp.eq.s32.totalorder %s107, 0
    %s110 = sadd.s32 %s109, 1
    %s111 = scalar_select %p108, %s109, %s110
    %p114 = pneg %p108
    %p115 = scmp.eq.s32.totalorder %s10, 1
    %p116 = por %p114, %p115
    %p117 = scmp.ne.s32.totalorder %s109, %s112
    %p118 = scmp.eq.s32.totalorder %s10, 0
    %p119 = por %p117, %p118
    %p120 = scmp.ne.s32.totalorder %s109, %s112
    %p121 = scmp.eq.s32.totalorder %s15, 1
    %p122 = por %p120, %p121
    %p123 = scmp.ne.s32.totalorder %s112, %s113
    %p124 = scmp.eq.s32.totalorder %s15, 0
    %p125 = por %p123, %p124
    %p126 = scmp.ne.s32.totalorder %s112, %s113
    %p127 = scmp.eq.s32.totalorder %s16, 1
    %p128 = por %p126, %p127
    %p130 = scmp.ne.s32.totalorder %s113, %s129
    %p131 = scmp.eq.s32.totalorder %s16, 0
    %p132 = por %p130, %p131
    %p133 = scmp.le.s32.totalorder 1, %s10
    %p134 = scmp.lt.s32.totalorder %s10, 3
    %p135 = pnand %p133, %p134
    %p136 = pneg %p135
    // Predicated region
    $region9: #{conv_forward.3} parent=5 // pred_check
      _
    $region10: #{conv_forward.3} parent=5 // pred_check_branch
      %138 = sbr.rel (%p135) target = $region12
    $region11: #{conv_forward.3} parent=5 // pred_region
      %s139 = ssub.s32 %s10, 1
      // Predicated region
      $region13: #{conv_forward.3} parent=11 // pred_check
        %p140 = pneg %p31
      $region14: #{conv_forward.3} parent=11 // pred_check_branch
        %142 = sbr.rel (%p140) target = $region16
      $region15: #{conv_forward.3} parent=11 // pred_region
        _
      $region16: #{conv_forward.3} parent=11 // pred_fallthru
        _
      // Predicated region
      $region17: #{conv_forward.3} parent=11 // pred_check
        %p143 = pneg %p52
      $region18: #{conv_forward.3} parent=11 // pred_check_branch
        %145 = sbr.rel (%p143) target = $region20
      $region19: #{conv_forward.3} parent=11 // pred_region
        _
      $region20: #{conv_forward.3} parent=11 // pred_fallthru
        _
      // Predicated region
      $region21: #{conv_forward.3} parent=11 // pred_check
        %p146 = pneg %p73
      $region22: #{conv_forward.3} parent=11 // pred_check_branch
        %148 = sbr.rel (%p146) target = $region24
      $region23: #{conv_forward.3} parent=11 // pred_region
        _
      $region24: #{conv_forward.3} parent=11 // pred_fallthru
        _
    $region12: #{conv_forward.3} parent=5 // pred_fallthru
      _
    %p149 = scmp.lt.s32.totalorder %s10, 2
    // Predicated region
    $region25: #{conv_forward.3} parent=5 // pred_check
      %p150 = pneg %p149
    $region26: #{conv_forward.3} parent=5 // pred_check_branch
      %152 = sbr.rel (%p150) target = $region28
    $region27: #{conv_forward.3} parent=5 // pred_region
      // Predicated region
      $region29: #{conv_forward.3} parent=27 // pred_check
        %p153 = pneg %p93
      $region30: #{conv_forward.3} parent=27 // pred_check_branch
        %155 = sbr.rel (%p153) target = $region32
      $region31: #{conv_forward.3} parent=27 // pred_region
        %p156 = scmp.lt.s32.totalorder %s10, 1
        %s157 = scalar_select %p156, %s10, 1
        %s158 = smul.addr %s157, 32
        %s159 = smul.addr %s158, 8
        %s160 = scalar_lea.vmem %s3, %s159
      $region32: #{conv_forward.3} parent=27 // pred_fallthru
        _
    $region28: #{conv_forward.3} parent=5 // pred_fallthru
      _
    %p161 = scmp.le.s32.totalorder 1, %s10
    %p162 = scmp.lt.s32.totalorder %s10, 3
    %p163 = pnand %p161, %p162
    %p164 = pneg %p163
    // Predicated region
    $region33: #{conv_forward.3} parent=5 // pred_check
      _
    $region34: #{conv_forward.3} parent=5 // pred_check_branch
      %166 = sbr.rel (%p163) target = $region36
    $region35: #{conv_forward.3} parent=5 // pred_region
      %s167 = ssub.s32 %s10, 1
      %p168 = pneg %p31
      %p169 = pneg %p28
      %p170 = pneg %p52
      %p171 = pneg %p49
      %p172 = pneg %p73
      %p173 = pneg %p70
      %p174 = scmp.lt.s32.totalorder %s15, 1
      %s175 = scalar_select %p174, %s15, 1
      %s176 = smul.addr %s175, 32
      %s177 = smul.addr %s176, 8
      %s178 = scalar_lea.vmem %s3, %s177
      %p179 = pneg %p99
      %p180 = pneg %p96
      %p181 = pneg %p125
      %p182 = pneg %p122
      %p183 = scmp.lt.s32.totalorder %s15, 1
      %s184 = scalar_select %p183, %s15, 1
      %s185 = smul.addr %s184, 32
      %s186 = smul.addr %s185, 8
      %s187 = scalar_lea.vmem %s4, %s186
      %p188 = scmp.lt.s32.totalorder %s15, 1
      %s189 = scalar_select %p188, %s15, 1
      %s190 = smul.addr %s189, 32
      %s191 = smul.addr %s190, 8
      %s192 = scalar_lea.vmem %s3, %s191
      %p193 = scmp.lt.s32.totalorder %s15, 1
      %s194 = scalar_select %p193, %s15, 1
      %s195 = smul.addr %s194, 32
      %s196 = smul.addr %s195, 8
      %s197 = scalar_lea.vmem %s4, %s196
      %v198 = vld [vmem:[%s0] sm:$0x3]
      %v199 = vld [vmem:[%s0 + $0x2] sm:$0x3]
      %vm200 = vcmask 1041408
      %v201 = vsel %vm200, %v198, 0.0
      %v202 = vsel %vm200, %v199, 0.0
      %v203 = vadd.f32 %v201, %v202
      %v204 = vmul.f32 %v203, 0.001953125
      %v205 = vmul.f32 %v204, %v204
      %v207 = vrot.slane %v205, 7
      %v209 = vsub.f32 %v204, %v207
      %v210 = vmax.f32 %v209, 0.0
      %v211 = vadd.f32 %v210, 1e-05
      %v212 = vrsqrt.pop %v211
      %v213 = vld [vmem:[%s1] sm:$0x1]
      %v216 = vunpack.c.l.s4 1966171168
      %v217 = vunpack.c.0.s8 %v216
      %v218 = vlaneseq
      %v219 = vshrl.u32 %v218, 7
      %v220 = vsub.s32 %v217, %v219
      %v221 = vrot.slane %v212, %v220
      %v222 = vcombine.high %v221, %v221
      %v224 = vunpack.c.l.s4 1966171168
      %v225 = vunpack.c.0.s8 %v224
      %v226 = vlaneseq
      %v227 = vshrl.u32 %v226, 7
      %v228 = vsub.s32 %v225, %v227
      %v229 = vrot.slane %v222, %v228
      %v231 = vmul.f32 %v213, %v229
      %v232 = vld [vmem:[%s2] sm:$0x1]
      %v233 = vmul.f32 %v204, %v231
      %v234 = vsub.f32 %v232, %v233
      %v235 = vld [vmem:[%s192] sm:$0xff]
      %v236 = vld [vmem:[%s192 + $0x8] sm:$0xff]
      %v237 = vld [vmem:[%s192 + $0x10] sm:$0xff]
      %v238 = vld [vmem:[%s192 + $0x18] sm:$0xff]
      %v239 = vld [vmem:[%s192 + $0x20] sm:$0xff]
      %v240 = vld [vmem:[%s192 + $0x28] sm:$0xff]
      %v241 = vld [vmem:[%s192 + $0x30] sm:$0xff]
      %v242 = vld [vmem:[%s192 + $0x38] sm:$0xff]
      %v243 = vld [vmem:[%s192 + $0x40] sm:$0xff]
      %v244 = vld [vmem:[%s192 + $0x48] sm:$0xff]
      %v245 = vld [vmem:[%s192 + $0x50] sm:$0xff]
      %v246 = vld [vmem:[%s192 + $0x58] sm:$0xff]
      %v247 = vld [vmem:[%s192 + $0x60] sm:$0xff]
      %v248 = vld [vmem:[%s192 + $0x68] sm:$0xff]
      %v249 = vld [vmem:[%s192 + $0x70] sm:$0xff]
      %v250 = vld [vmem:[%s192 + $0x78] sm:$0xff]
      %v251 = vld [vmem:[%s192 + $0x80] sm:$0xff]
      %v252 = vld [vmem:[%s192 + $0x88] sm:$0xff]
      %v253 = vld [vmem:[%s192 + $0x90] sm:$0xff]
      %v254 = vld [vmem:[%s192 + $0x98] sm:$0xff]
      %v255 = vld [vmem:[%s192 + $0xa0] sm:$0xff]
      %v256 = vld [vmem:[%s192 + $0xa8] sm:$0xff]
      %v257 = vld [vmem:[%s192 + $0xb0] sm:$0xff]
      %v258 = vld [vmem:[%s192 + $0xb8] sm:$0xff]
      %v259 = vld [vmem:[%s192 + $0xc0] sm:$0xff]
      %v260 = vld [vmem:[%s192 + $0xc8] sm:$0xff]
      %v261 = vld [vmem:[%s192 + $0xd0] sm:$0xff]
      %v262 = vld [vmem:[%s192 + $0xd8] sm:$0xff]
      %v263 = vld [vmem:[%s192 + $0xe0] sm:$0xff]
      %v264 = vld [vmem:[%s192 + $0xe8] sm:$0xff]
      %v265 = vld [vmem:[%s192 + $0xf0] sm:$0xff]
      %v266 = vld [vmem:[%s192 + $0xf8] sm:$0xff]
      %v268 = vlaneseq
      %v269 = vshrl.u32 %v268, 7
      %v270 = vsub.s32 0, %v269
      %v271 = vrot.slane %v231, %v270
      %v273 = vmul.f32 %v235, %v271
      %v274 = vmul.f32 %v236, %v271
      %v275 = vmul.f32 %v237, %v271
      %v276 = vmul.f32 %v238, %v271
      %v277 = vmul.f32 %v239, %v271
      %v278 = vmul.f32 %v240, %v271
      %v279 = vmul.f32 %v241, %v271
      %v280 = vmul.f32 %v242, %v271
      %v281 = vmul.f32 %v243, %v271
      %v282 = vmul.f32 %v244, %v271
      %v283 = vmul.f32 %v245, %v271
      %v284 = vmul.f32 %v246, %v271
      %v285 = vmul.f32 %v247, %v271
      %v286 = vmul.f32 %v248, %v271
      %v287 = vmul.f32 %v249, %v271
      %v288 = vmul.f32 %v250, %v271
      %v289 = vmul.f32 %v251, %v271
      %v290 = vmul.f32 %v252, %v271
      %v291 = vmul.f32 %v253, %v271
      %v292 = vmul.f32 %v254, %v271
      %v293 = vmul.f32 %v255, %v271
      %v294 = vmul.f32 %v256, %v271
      %v295 = vmul.f32 %v257, %v271
      %v296 = vmul.f32 %v258, %v271
      %v297 = vmul.f32 %v259, %v271
      %v298 = vmul.f32 %v260, %v271
      %v299 = vmul.f32 %v261, %v271
      %v300 = vmul.f32 %v262, %v271
      %v301 = vmul.f32 %v263, %v271
      %v302 = vmul.f32 %v264, %v271
      %v303 = vmul.f32 %v265, %v271
      %v304 = vmul.f32 %v266, %v271
      %v306 = vlaneseq
      %v307 = vshrl.u32 %v306, 7
      %v308 = vsub.s32 0, %v307
      %v309 = vrot.slane %v234, %v308
      %v311 = vadd.f32 %v273, %v309
      %v312 = vadd.f32 %v274, %v309
      %v313 = vadd.f32 %v275, %v309
      %v314 = vadd.f32 %v276, %v309
      %v315 = vadd.f32 %v277, %v309
      %v316 = vadd.f32 %v278, %v309
      %v317 = vadd.f32 %v279, %v309
      %v318 = vadd.f32 %v280, %v309
      %v319 = vadd.f32 %v281, %v309
      %v320 = vadd.f32 %v282, %v309
      %v321 = vadd.f32 %v283, %v309
      %v322 = vadd.f32 %v284, %v309
      %v323 = vadd.f32 %v285, %v309
      %v324 = vadd.f32 %v286, %v309
      %v325 = vadd.f32 %v287, %v309
      %v326 = vadd.f32 %v288, %v309
      %v327 = vadd.f32 %v289, %v309
      %v328 = vadd.f32 %v290, %v309
      %v329 = vadd.f32 %v291, %v309
      %v330 = vadd.f32 %v292, %v309
      %v331 = vadd.f32 %v293, %v309
      %v332 = vadd.f32 %v294, %v309
      %v333 = vadd.f32 %v295, %v309
      %v334 = vadd.f32 %v296, %v309
      %v335 = vadd.f32 %v297, %v309
      %v336 = vadd.f32 %v298, %v309
      %v337 = vadd.f32 %v299, %v309
      %v338 = vadd.f32 %v300, %v309
      %v339 = vadd.f32 %v301, %v309
      %v340 = vadd.f32 %v302, %v309
      %v341 = vadd.f32 %v303, %v309
      %v342 = vadd.f32 %v304, %v309
      %343 = vst [vmem:[%s197] sm:$0xff] %v311
      %344 = vst [vmem:[%s197 + $0x8] sm:$0xff] %v312
      %345 = vst [vmem:[%s197 + $0x10] sm:$0xff] %v313
      %346 = vst [vmem:[%s197 + $0x18] sm:$0xff] %v314
      %347 = vst [vmem:[%s197 + $0x20] sm:$0xff] %v315
      %348 = vst [vmem:[%s197 + $0x28] sm:$0xff] %v316
      %349 = vst [vmem:[%s197 + $0x30] sm:$0xff] %v317
      %350 = vst [vmem:[%s197 + $0x38] sm:$0xff] %v318
      %351 = vst [vmem:[%s197 + $0x40] sm:$0xff] %v319
      %352 = vst [vmem:[%s197 + $0x48] sm:$0xff] %v320
      %353 = vst [vmem:[%s197 + $0x50] sm:$0xff] %v321
      %354 = vst [vmem:[%s197 + $0x58] sm:$0xff] %v322
      %355 = vst [vmem:[%s197 + $0x60] sm:$0xff] %v323
      %356 = vst [vmem:[%s197 + $0x68] sm:$0xff] %v324
      %357 = vst [vmem:[%s197 + $0x70] sm:$0xff] %v325
      %358 = vst [vmem:[%s197 + $0x78] sm:$0xff] %v326
      %359 = vst [vmem:[%s197 + $0x80] sm:$0xff] %v327
      %360 = vst [vmem:[%s197 + $0x88] sm:$0xff] %v328
      %361 = vst [vmem:[%s197 + $0x90] sm:$0xff] %v329
      %362 = vst [vmem:[%s197 + $0x98] sm:$0xff] %v330
      %363 = vst [vmem:[%s197 + $0xa0] sm:$0xff] %v331
      %364 = vst [vmem:[%s197 + $0xa8] sm:$0xff] %v332
      %365 = vst [vmem:[%s197 + $0xb0] sm:$0xff] %v333
      %366 = vst [vmem:[%s197 + $0xb8] sm:$0xff] %v334
      %367 = vst [vmem:[%s197 + $0xc0] sm:$0xff] %v335
      %368 = vst [vmem:[%s197 + $0xc8] sm:$0xff] %v336
      %369 = vst [vmem:[%s197 + $0xd0] sm:$0xff] %v337
      %370 = vst [vmem:[%s197 + $0xd8] sm:$0xff] %v338
      %371 = vst [vmem:[%s197 + $0xe0] sm:$0xff] %v339
      %372 = vst [vmem:[%s197 + $0xe8] sm:$0xff] %v340
      %373 = vst [vmem:[%s197 + $0xf0] sm:$0xff] %v341
      %374 = vst [vmem:[%s197 + $0xf8] sm:$0xff] %v342
      %p375 = scmp.lt.s32.totalorder %s15, 1
      %s376 = scalar_select %p375, %s15, 1
      %s377 = smul.addr %s376, 32
      %s378 = smul.addr %s377, 8
      %s379 = scalar_lea.vmem %s4, %s378
      // Predicated region
      $region37: #{conv_forward.3} parent=35 // pred_check
        %p380 = pneg %p122
      $region38: #{conv_forward.3} parent=35 // pred_check_branch
        %382 = sbr.rel (%p380) target = $region40
      $region39: #{conv_forward.3} parent=35 // pred_region
        _
      $region40: #{conv_forward.3} parent=35 // pred_fallthru
        _
    $region36: #{conv_forward.3} parent=5 // pred_fallthru
      _
    %p383 = scmp.le.s32.totalorder 2, %s10
    // Predicated region
    $region41: #{conv_forward.3} parent=5 // pred_check
      %p384 = pneg %p383
    $region42: #{conv_forward.3} parent=5 // pred_check_branch
      %386 = sbr.rel (%p384) target = $region44
    $region43: #{conv_forward.3} parent=5 // pred_region
      %s387 = ssub.s32 %s10, 2
      // Predicated region
      $region45: #{conv_forward.3} parent=43 // pred_check
        %p388 = pneg %p128
      $region46: #{conv_forward.3} parent=43 // pred_check_branch
        %390 = sbr.rel (%p388) target = $region48
      $region47: #{conv_forward.3} parent=43 // pred_region
        %p391 = scmp.lt.s32.totalorder %s16, 1
        %s392 = scalar_select %p391, %s16, 1
        %s393 = smul.addr %s392, 32
        %s394 = smul.addr %s393, 8
        %s395 = scalar_lea.vmem %s4, %s394
      $region48: #{conv_forward.3} parent=43 // pred_fallthru
        _
    $region44: #{conv_forward.3} parent=5 // pred_fallthru
      _
  $region6: #{conv_forward.3} parent=0 // loop_footer
    %s14 = sadd.s32 1, %s10
  $region7: #{conv_forward.3} parent=0 // loop_footer_branch
    %9 = sbr.rel target = $region3
  $region8: #{conv_forward.3} parent=0 // loop_exit
    _

// kernel: conv_forward.2
$region0: #{conv_forward.2}
  #allocation0 [shape = 'u32[]', space=smem, size = 0x4, offset = 0x4, fixed_abs, tag = 'smem constant byte address 0x4 - core index']
  #allocation1 [shape = 'u32[144,128]{1,0:T(1,128)}', space=vmem, size = 0x12000, scoped, tag = 'internal scratch']
  %s0 = inlined_call_operand.vmem [shape: bf16[2,18,18,128], index: 0, kind: input, shape index: {}]
  %s1 = inlined_call_operand.vmem [shape: bf16[1152,128], index: 1, kind: input, shape index: {}]
  %s2 = inlined_call_operand.vmem [shape: f32[1,128], index: 2, kind: input, shape index: {}]
  %s3 = inlined_call_operand.vmem [shape: f32[2,256,128], index: 3, kind: output, shape index: {0}]
  %s4 = inlined_call_operand.vmem [shape: f32[2,2,128], index: 4, kind: output, shape index: {1}]
  %5 = xla_tuple %s3, %s4
  %s6 = sld [smem:[#allocation0]]
  $region53: #{conv_forward.2} parent=0
    _
  %s8 = ssub.s32 1, %s6
  %s9 = scalar_select 0, %s8, %s6
  loop: start=0, step=1, limit=4
  $region2: #{conv_forward.2} parent=0 // loop_pre_header
    _
  $region3: #{conv_forward.2} parent=0 // loop_header
    %s11 = sphi 0, %s15
    %p12 = scmp.ge.s32.totalorder %s11, 4
    %s21 = sphi 0, %s23
    %s24 = sphi 0, %s21
    %s25 = sphi 0, %s24
    %s41 = sphi 0, %s25
    %s45 = sphi 0, %s45
    %s47 = sphi 0, %s45
    %s48 = sphi 0, %s47
    %s62 = sphi 0, %s48
    %s66 = sphi 0, %s66
    %s68 = sphi 0, %s66
    %s69 = sphi 0, %s68
    %s83 = sphi 0, %s69
    %s89 = sphi 0, %s91
    %s92 = sphi 0, %s89
    %s93 = sphi 0, %s92
    %s109 = sphi 0, %s93
    %s115 = sphi 0, %s117
    %s118 = sphi 0, %s115
    %s119 = sphi 0, %s118
    %s135 = sphi 0, %s119
  $region4: #{conv_forward.2} parent=0 // loop_header_branch
    %14 = sbr.rel (%p12) target = $region8
  $region5: #{conv_forward.2} parent=0 // loop_body
    %s16 = ssub.s32 %s11, 1
    %s17 = ssub.s32 %s11, 2
    %s18 = sadd.s32 %s11, 1
    %s19 = ssub.s32 %s11, %s18
    %p20 = scmp.eq.s32.totalorder %s19, 0
    %s22 = sadd.s32 %s21, 1
    %s23 = scalar_select %p20, %s21, %s22
    %p26 = pneg %p20
    %p27 = scmp.eq.s32.totalorder %s11, 1
    %p28 = por %p26, %p27
    %p29 = scmp.ne.s32.totalorder %s21, %s24
    %p30 = scmp.eq.s32.totalorder %s11, 0
    %p31 = por %p29, %p30
    %p32 = scmp.ne.s32.totalorder %s21, %s24
    %p33 = scmp.eq.s32.totalorder %s16, 1
    %p34 = por %p32, %p33
    %p35 = scmp.ne.s32.totalorder %s24, %s25
    %p36 = scmp.eq.s32.totalorder %s16, 0
    %p37 = por %p35, %p36
    %p38 = scmp.ne.s32.totalorder %s24, %s25
    %p39 = scmp.eq.s32.totalorder %s17, 1
    %p40 = por %p38, %p39
    %p42 = scmp.ne.s32.totalorder %s25, %s41
    %p43 = scmp.eq.s32.totalorder %s17, 0
    %p44 = por %p42, %p43
    %s46 = sadd.s32 %s45, 1
    %p49 = scmp.eq.s32.totalorder %s11, 1
    %p50 = scmp.ne.s32.totalorder %s45, %s47
    %p51 = scmp.eq.s32.totalorder %s11, 0
    %p52 = por %p50, %p51
    %p53 = scmp.ne.s32.totalorder %s45, %s47
    %p54 = scmp.eq.s32.totalorder %s16, 1
    %p55 = por %p53, %p54
    %p56 = scmp.ne.s32.totalorder %s47, %s48
    %p57 = scmp.eq.s32.totalorder %s16, 0
    %p58 = por %p56, %p57
    %p59 = scmp.ne.s32.totalorder %s47, %s48
    %p60 = scmp.eq.s32.totalorder %s17, 1
    %p61 = por %p59, %p60
    %p63 = scmp.ne.s32.totalorder %s48, %s62
    %p64 = scmp.eq.s32.totalorder %s17, 0
    %p65 = por %p63, %p64
    %s67 = sadd.s32 %s66, 1
    %p70 = scmp.eq.s32.totalorder %s11, 1
    %p71 = scmp.ne.s32.totalorder %s66, %s68
    %p72 = scmp.eq.s32.totalorder %s11, 0
    %p73 = por %p71, %p72
    %p74 = scmp.ne.s32.totalorder %s66, %s68
    %p75 = scmp.eq.s32.totalorder %s16, 1
    %p76 = por %p74, %p75
    %p77 = scmp.ne.s32.totalorder %s68, %s69
    %p78 = scmp.eq.s32.totalorder %s16, 0
    %p79 = por %p77, %p78
    %p80 = scmp.ne.s32.totalorder %s68, %s69
    %p81 = scmp.eq.s32.totalorder %s17, 1
    %p82 = por %p80, %p81
    %p84 = scmp.ne.s32.totalorder %s69, %s83
    %p85 = scmp.eq.s32.totalorder %s17, 0
    %p86 = por %p84, %p85
    %s87 = ssub.s32 %s11, %s18
    %p88 = scmp.eq.s32.totalorder %s87, 0
    %s90 = sadd.s32 %s89, 1
    %s91 = scalar_select %p88, %s89, %s90
    %p94 = pneg %p88
    %p95 = scmp.eq.s32.totalorder %s11, 1
    %p96 = por %p94, %p95
    %p97 = scmp.ne.s32.totalorder %s89, %s92
    %p98 = scmp.eq.s32.totalorder %s11, 0
    %p99 = por %p97, %p98
    %p100 = scmp.ne.s32.totalorder %s89, %s92
    %p101 = scmp.eq.s32.totalorder %s16, 1
    %p102 = por %p100, %p101
    %p103 = scmp.ne.s32.totalorder %s92, %s93
    %p104 = scmp.eq.s32.totalorder %s16, 0
    %p105 = por %p103, %p104
    %p106 = scmp.ne.s32.totalorder %s92, %s93
    %p107 = scmp.eq.s32.totalorder %s17, 1
    %p108 = por %p106, %p107
    %p110 = scmp.ne.s32.totalorder %s93, %s109
    %p111 = scmp.eq.s32.totalorder %s17, 0
    %p112 = por %p110, %p111
    %s113 = ssub.s32 %s11, %s18
    %p114 = scmp.eq.s32.totalorder %s113, 0
    %s116 = sadd.s32 %s115, 1
    %s117 = scalar_select %p114, %s115, %s116
    %p120 = pneg %p114
    %p121 = scmp.eq.s32.totalorder %s11, 1
    %p122 = por %p120, %p121
    %p123 = scmp.ne.s32.totalorder %s115, %s118
    %p124 = scmp.eq.s32.totalorder %s11, 0
    %p125 = por %p123, %p124
    %p126 = scmp.ne.s32.totalorder %s115, %s118
    %p127 = scmp.eq.s32.totalorder %s16, 1
    %p128 = por %p126, %p127
    %p129 = scmp.ne.s32.totalorder %s118, %s119
    %p130 = scmp.eq.s32.totalorder %s16, 0
    %p131 = por %p129, %p130
    %p132 = scmp.ne.s32.totalorder %s118, %s119
    %p133 = scmp.eq.s32.totalorder %s17, 1
    %p134 = por %p132, %p133
    %p136 = scmp.ne.s32.totalorder %s119, %s135
    %p137 = scmp.eq.s32.totalorder %s17, 0
    %p138 = por %p136, %p137
    %p139 = scmp.le.s32.totalorder 1, %s11
    %p140 = scmp.lt.s32.totalorder %s11, 3
    %p141 = pnand %p139, %p140
    %p142 = pneg %p141
    // Predicated region
    $region9: #{conv_forward.2} parent=5 // pred_check
      _
    $region10: #{conv_forward.2} parent=5 // pred_check_branch
      %144 = sbr.rel (%p141) target = $region12
    $region11: #{conv_forward.2} parent=5 // pred_region
      %s145 = ssub.s32 %s11, 1
      // Predicated region
      $region13: #{conv_forward.2} parent=11 // pred_check
        %p146 = pneg %p58
      $region14: #{conv_forward.2} parent=11 // pred_check_branch
        %148 = sbr.rel (%p146) target = $region16
      $region15: #{conv_forward.2} parent=11 // pred_region
        _
      $region16: #{conv_forward.2} parent=11 // pred_fallthru
        _
      // Predicated region
      $region17: #{conv_forward.2} parent=11 // pred_check
        %p149 = pneg %p79
      $region18: #{conv_forward.2} parent=11 // pred_check_branch
        %151 = sbr.rel (%p149) target = $region20
      $region19: #{conv_forward.2} parent=11 // pred_region
        _
      $region20: #{conv_forward.2} parent=11 // pred_fallthru
        _
    $region12: #{conv_forward.2} parent=5 // pred_fallthru
      _
    %p152 = scmp.lt.s32.totalorder %s11, 2
    // Predicated region
    $region21: #{conv_forward.2} parent=5 // pred_check
      %p153 = pneg %p152
    $region22: #{conv_forward.2} parent=5 // pred_check_branch
      %155 = sbr.rel (%p153) target = $region24
    $region23: #{conv_forward.2} parent=5 // pred_region
      // Predicated region
      $region25: #{conv_forward.2} parent=23 // pred_check
        %p156 = pneg %p31
      $region26: #{conv_forward.2} parent=23 // pred_check_branch
        %158 = sbr.rel (%p156) target = $region28
      $region27: #{conv_forward.2} parent=23 // pred_region
        %p159 = scmp.lt.s32.totalorder %s11, 1
        %s160 = scalar_select %p159, %s11, 1
        %s161 = smul.addr %s160, 54
        %s162 = smul.addr %s161, 4
        %s163 = scalar_lea.vmem %s0, %s162
      $region28: #{conv_forward.2} parent=23 // pred_fallthru
        _
    $region24: #{conv_forward.2} parent=5 // pred_fallthru
      _
    %p164 = scmp.le.s32.totalorder 1, %s11
    %p165 = scmp.lt.s32.totalorder %s11, 3
    %p166 = pnand %p164, %p165
    %p167 = pneg %p166
    // Predicated region
    $region29: #{conv_forward.2} parent=5 // pred_check
      _
    $region30: #{conv_forward.2} parent=5 // pred_check_branch
      %169 = sbr.rel (%p166) target = $region32
    $region31: #{conv_forward.2} parent=5 // pred_region
      %s170 = ssub.s32 %s11, 1
      %p171 = scmp.lt.s32.totalorder %s16, 1
      %s172 = scalar_select %p171, %s16, 1
      %s173 = smul.addr %s172, 54
      %s174 = smul.addr %s173, 4
      %s175 = scalar_lea.vmem %s0, %s174
      %p176 = pneg %p37
      %p177 = pneg %p34
      %p178 = pneg %p58
      %p179 = pneg %p55
      %p180 = pneg %p79
      %p181 = pneg %p76
      %p182 = pneg %p105
      %p183 = pneg %p102
      %p184 = scmp.lt.s32.totalorder %s16, 1
      %s185 = scalar_select %p184, %s16, 1
      %s186 = smul.addr %s185, 32
      %s187 = smul.addr %s186, 8
      %s188 = scalar_lea.vmem %s3, %s187
      %p189 = pneg %p131
      %p190 = pneg %p128
      %p191 = scmp.lt.s32.totalorder %s16, 1
      %s192 = scalar_select %p191, %s16, 1
      %s193 = smul.addr %s192, 2
      %s194 = scalar_lea.vmem %s4, %s193
      %p195 = scmp.lt.s32.totalorder %s16, 1
      %s196 = scalar_select %p195, %s16, 1
      %s197 = smul.addr %s196, 54
      %s198 = smul.addr %s197, 4
      %s199 = scalar_lea.vmem %s0, %s198
      %p200 = scmp.lt.s32.totalorder %s16, 1
      %s201 = scalar_select %p200, %s16, 1
      %s202 = smul.addr %s201, 32
      %s203 = smul.addr %s202, 8
      %s204 = scalar_lea.vmem %s3, %s203
      %p205 = scmp.lt.s32.totalorder %s16, 1
      %s206 = scalar_select %p205, %s16, 1
      %s207 = smul.addr %s206, 2
      %s208 = scalar_lea.vmem %s4, %s207
      %v210 = vld [vmem:[%s199] sm:$0xf]
      %v211 = vld [vmem:[%s199 + $0x4] sm:$0xf]
      %v212 = vld [vmem:[%s199 + $0x8] sm:$0x1]
      %v213 = vld [vmem:[%s199 + $0xc] sm:$0xf]
      %v214 = vld [vmem:[%s199 + $0x10] sm:$0xf]
      %v215 = vld [vmem:[%s199 + $0x14] sm:$0x1]
      %v216 = vld [vmem:[%s199 + $0x18] sm:$0xf]
      %v217 = vld [vmem:[%s199 + $0x1c] sm:$0xf]
      %v218 = vld [vmem:[%s199 + $0x20] sm:$0x1]
      %v219 = vld [vmem:[%s199 + $0x24] sm:$0xf]
      %v220 = vld [vmem:[%s199 + $0x28] sm:$0xf]
      %v221 = vld [vmem:[%s199 + $0x2c] sm:$0x1]
      %v222 = vld [vmem:[%s199 + $0x30] sm:$0xf]
      %v223 = vld [vmem:[%s199 + $0x34] sm:$0xf]
      %v224 = vld [vmem:[%s199 + $0x38] sm:$0x1]
      %v225 = vld [vmem:[%s199 + $0x3c] sm:$0xf]
      %v226 = vld [vmem:[%s199 + $0x40] sm:$0xf]
      %v227 = vld [vmem:[%s199 + $0x44] sm:$0x1]
      %v228 = vld [vmem:[%s199 + $0x48] sm:$0xf]
      %v229 = vld [vmem:[%s199 + $0x4c] sm:$0xf]
      %v230 = vld [vmem:[%s199 + $0x50] sm:$0x1]
      %v231 = vld [vmem:[%s199 + $0x54] sm:$0xf]
      %v232 = vld [vmem:[%s199 + $0x58] sm:$0xf]
      %v233 = vld [vmem:[%s199 + $0x5c] sm:$0x1]
      %v234 = vld [vmem:[%s199 + $0x60] sm:$0xf]
      %v235 = vld [vmem:[%s199 + $0x64] sm:$0xf]
      %v236 = vld [vmem:[%s199 + $0x68] sm:$0x1]
      %v237 = vld [vmem:[%s199 + $0x6c] sm:$0xf]
      %v238 = vld [vmem:[%s199 + $0x70] sm:$0xf]
      %v239 = vld [vmem:[%s199 + $0x74] sm:$0x1]
      %v240 = vld [vmem:[%s199 + $0x78] sm:$0xf]
      %v241 = vld [vmem:[%s199 + $0x7c] sm:$0xf]
      %v242 = vld [vmem:[%s199 + $0x80] sm:$0x1]
      %v243 = vld [vmem:[%s199 + $0x84] sm:$0xf]
      %v244 = vld [vmem:[%s199 + $0x88] sm:$0xf]
      %v245 = vld [vmem:[%s199 + $0x8c] sm:$0x1]
      %v246 = vld [vmem:[%s199 + $0x90] sm:$0xf]
      %v247 = vld [vmem:[%s199 + $0x94] sm:$0xf]
      %v248 = vld [vmem:[%s199 + $0x98] sm:$0x1]
      %v249 = vld [vmem:[%s199 + $0x9c] sm:$0xf]
      %v250 = vld [vmem:[%s199 + $0xa0] sm:$0xf]
      %v251 = vld [vmem:[%s199 + $0xa4] sm:$0x1]
      %v252 = vld [vmem:[%s199 + $0xa8] sm:$0xf]
      %v253 = vld [vmem:[%s199 + $0xac] sm:$0xf]
      %v254 = vld [vmem:[%s199 + $0xb0] sm:$0x1]
      %v255 = vld [vmem:[%s199 + $0xb4] sm:$0xf]
      %v256 = vld [vmem:[%s199 + $0xb8] sm:$0xf]
      %v257 = vld [vmem:[%s199 + $0xbc] sm:$0x1]
      %v258 = vld [vmem:[%s199 + $0xc0] sm:$0xf]
      %v259 = vld [vmem:[%s199 + $0xc4] sm:$0xf]
      %v260 = vld [vmem:[%s199 + $0xc8] sm:$0x1]
      %v261 = vld [vmem:[%s199 + $0xcc] sm:$0xf]
      %v262 = vld [vmem:[%s199 + $0xd0] sm:$0xf]
      %v263 = vld [vmem:[%s199 + $0xd4] sm:$0x1]
      %vm264 = vsmask.f32 3328
      %vm265 = vsmask.f32 7440
      %vm266 = vmor %vm264, %vm265
      %v268 = vshrl.u32 %v210, 16
      %v270 = vrot.slane %v268, 4
      %v271 = vshll.u32 %v210, 16
      %v273 = vrot.slane %v271, 5
      %v274 = vor.u32 %v270, %v273
      %v275 = vrot.slane %v274, 4
      %v277 = vshll.u32 %v211, 16
      %v279 = vrot.slane %v277, 5
      %v280 = vsel %vm266, %v275, %v279
      %v281 = vshrl.u32 %v211, 16
      %v283 = vrot.slane %v281, 4
      %v284 = vor.u32 %v283, %v279
      %v285 = vrot.slane %v284, 4
      %v287 = vshll.u32 %v212, 16
      %v289 = vrot.slane %v287, 5
      %v290 = vsel %vm266, %v285, %v289
      %v292 = vshrl.u32 %v213, 16
      %v294 = vrot.slane %v292, 4
      %v295 = vshll.u32 %v213, 16
      %v297 = vrot.slane %v295, 5
      %v298 = vor.u32 %v294, %v297
      %v299 = vrot.slane %v298, 4
      %v301 = vshll.u32 %v214, 16
      %v303 = vrot.slane %v301, 5
      %v304 = vsel %vm266, %v299, %v303
      %v305 = vshrl.u32 %v214, 16
      %v307 = vrot.slane %v305, 4
      %v308 = vor.u32 %v307, %v303
      %v309 = vrot.slane %v308, 4
      %v311 = vshll.u32 %v215, 16
      %v313 = vrot.slane %v311, 5
      %v314 = vsel %vm266, %v309, %v313
      %v316 = vshrl.u32 %v216, 16
      %v318 = vrot.slane %v316, 4
      %v319 = vshll.u32 %v216, 16
      %v321 = vrot.slane %v319, 5
      %v322 = vor.u32 %v318, %v321
      %v323 = vrot.slane %v322, 4
      %v325 = vshll.u32 %v217, 16
      %v327 = vrot.slane %v325, 5
      %v328 = vsel %vm266, %v323, %v327
      %v329 = vshrl.u32 %v217, 16
      %v331 = vrot.slane %v329, 4
      %v332 = vor.u32 %v331, %v327
      %v333 = vrot.slane %v332, 4
      %v335 = vshll.u32 %v218, 16
      %v337 = vrot.slane %v335, 5
      %v338 = vsel %vm266, %v333, %v337
      %v340 = vshrl.u32 %v219, 16
      %v342 = vrot.slane %v340, 4
      %v343 = vshll.u32 %v219, 16
      %v345 = vrot.slane %v343, 5
      %v346 = vor.u32 %v342, %v345
      %v347 = vrot.slane %v346, 4
      %v349 = vshll.u32 %v220, 16
      %v351 = vrot.slane %v349, 5
      %v352 = vsel %vm266, %v347, %v351
      %v353 = vshrl.u32 %v220, 16
      %v355 = vrot.slane %v353, 4
      %v356 = vor.u32 %v355, %v351
      %v357 = vrot.slane %v356, 4
      %v359 = vshll.u32 %v221, 16
      %v361 = vrot.slane %v359, 5
      %v362 = vsel %vm266, %v357, %v361
      %v364 = vshrl.u32 %v222, 16
      %v366 = vrot.slane %v364, 4
      %v367 = vshll.u32 %v222, 16
      %v369 = vrot.slane %v367, 5
      %v370 = vor.u32 %v366, %v369
      %v371 = vrot.slane %v370, 4
      %v373 = vshll.u32 %v223, 16
      %v375 = vrot.slane %v373, 5
      %v376 = vsel %vm266, %v371, %v375
      %v377 = vshrl.u32 %v223, 16
      %v379 = vrot.slane %v377, 4
      %v380 = vor.u32 %v379, %v375
      %v381 = vrot.slane %v380, 4
      %v383 = vshll.u32 %v224, 16
      %v385 = vrot.slane %v383, 5
      %v386 = vsel %vm266, %v381, %v385
      %v388 = vshrl.u32 %v225, 16
      %v390 = vrot.slane %v388, 4
      %v391 = vshll.u32 %v225, 16
      %v393 = vrot.slane %v391, 5
      %v394 = vor.u32 %v390, %v393
      %v395 = vrot.slane %v394, 4
      %v397 = vshll.u32 %v226, 16
      %v399 = vrot.slane %v397, 5
      %v400 = vsel %vm266, %v395, %v399
      %v401 = vshrl.u32 %v226, 16
      %v403 = vrot.slane %v401, 4
      %v404 = vor.u32 %v403, %v399
      %v405 = vrot.slane %v404, 4
      %v407 = vshll.u32 %v227, 16
      %v409 = vrot.slane %v407, 5
      %v410 = vsel %vm266, %v405, %v409
      %v412 = vshrl.u32 %v228, 16
      %v414 = vrot.slane %v412, 4
      %v415 = vshll.u32 %v228, 16
      %v417 = vrot.slane %v415, 5
      %v418 = vor.u32 %v414, %v417
      %v419 = vrot.slane %v418, 4
      %v421 = vshll.u32 %v229, 16
      %v423 = vrot.slane %v421, 5
      %v424 = vsel %vm266, %v419, %v423
      %v425 = vshrl.u32 %v229, 16
      %v427 = vrot.slane %v425, 4
      %v428 = vor.u32 %v427, %v423
      %v429 = vrot.slane %v428, 4
      %v431 = vshll.u32 %v230, 16
      %v433 = vrot.slane %v431, 5
      %v434 = vsel %vm266, %v429, %v433
      %v436 = vshrl.u32 %v231, 16
      %v438 = vrot.slane %v436, 4
      %v439 = vshll.u32 %v231, 16
      %v441 = vrot.slane %v439, 5
      %v442 = vor.u32 %v438, %v441
      %v443 = vrot.slane %v442, 4
      %v445 = vshll.u32 %v232, 16
      %v447 = vrot.slane %v445, 5
      %v448 = vsel %vm266, %v443, %v447
      %v449 = vshrl.u32 %v232, 16
      %v451 = vrot.slane %v449, 4
      %v452 = vor.u32 %v451, %v447
      %v453 = vrot.slane %v452, 4
      %v455 = vshll.u32 %v233, 16
      %v457 = vrot.slane %v455, 5
      %v458 = vsel %vm266, %v453, %v457
      %v460 = vshrl.u32 %v234, 16
      %v462 = vrot.slane %v460, 4
      %v463 = vshll.u32 %v234, 16
      %v465 = vrot.slane %v463, 5
      %v466 = vor.u32 %v462, %v465
      %v467 = vrot.slane %v466, 4
      %v469 = vshll.u32 %v235, 16
      %v471 = vrot.slane %v469, 5
      %v472 = vsel %vm266, %v467, %v471
      %v473 = vshrl.u32 %v235, 16
      %v475 = vrot.slane %v473, 4
      %v476 = vor.u32 %v475, %v471
      %v477 = vrot.slane %v476, 4
      %v479 = vshll.u32 %v236, 16
      %v481 = vrot.slane %v479, 5
      %v482 = vsel %vm266, %v477, %v481
      %v484 = vshrl.u32 %v237, 16
      %v486 = vrot.slane %v484, 4
      %v487 = vshll.u32 %v237, 16
      %v489 = vrot.slane %v487, 5
      %v490 = vor.u32 %v486, %v489
      %v491 = vrot.slane %v490, 4
      %v493 = vshll.u32 %v238, 16
      %v495 = vrot.slane %v493, 5
      %v496 = vsel %vm266, %v491, %v495
      %v497 = vshrl.u32 %v238, 16
      %v499 = vrot.slane %v497, 4
      %v500 = vor.u32 %v499, %v495
      %v501 = vrot.slane %v500, 4
      %v503 = vshll.u32 %v239, 16
      %v505 = vrot.slane %v503, 5
      %v506 = vsel %vm266, %v501, %v505
      %v508 = vshrl.u32 %v240, 16
      %v510 = vrot.slane %v508, 4
      %v511 = vshll.u32 %v240, 16
      %v513 = vrot.slane %v511, 5
      %v514 = vor.u32 %v510, %v513
      %v515 = vrot.slane %v514, 4
      %v517 = vshll.u32 %v241, 16
      %v519 = vrot.slane %v517, 5
      %v520 = vsel %vm266, %v515, %v519
      %v521 = vshrl.u32 %v241, 16
      %v523 = vrot.slane %v521, 4
      %v524 = vor.u32 %v523, %v519
      %v525 = vrot.slane %v524, 4
      %v527 = vshll.u32 %v242, 16
      %v529 = vrot.slane %v527, 5
      %v530 = vsel %vm266, %v525, %v529
      %v532 = vshrl.u32 %v243, 16
      %v534 = vrot.slane %v532, 4
      %v535 = vshll.u32 %v243, 16
      %v537 = vrot.slane %v535, 5
      %v538 = vor.u32 %v534, %v537
      %v539 = vrot.slane %v538, 4
      %v541 = vshll.u32 %v244, 16
      %v543 = vrot.slane %v541, 5
      %v544 = vsel %vm266, %v539, %v543
      %v545 = vshrl.u32 %v244, 16
      %v547 = vrot.slane %v545, 4
      %v548 = vor.u32 %v547, %v543
      %v549 = vrot.slane %v548, 4
      %v551 = vshll.u32 %v245, 16
      %v553 = vrot.slane %v551, 5
      %v554 = vsel %vm266, %v549, %v553
      %v556 = vshrl.u32 %v246, 16
      %v558 = vrot.slane %v556, 4
      %v559 = vshll.u32 %v246, 16
      %v561 = vrot.slane %v559, 5
      %v562 = vor.u32 %v558, %v561
      %v563 = vrot.slane %v562, 4
      %v565 = vshll.u32 %v247, 16
      %v567 = vrot.slane %v565, 5
      %v568 = vsel %vm266, %v563, %v567
      %v569 = vshrl.u32 %v247, 16
      %v571 = vrot.slane %v569, 4
      %v572 = vor.u32 %v571, %v567
      %v573 = vrot.slane %v572, 4
      %v575 = vshll.u32 %v248, 16
      %v577 = vrot.slane %v575, 5
      %v578 = vsel %vm266, %v573, %v577
      %v580 = vshrl.u32 %v249, 16
      %v582 = vrot.slane %v580, 4
      %v583 = vshll.u32 %v249, 16
      %v585 = vrot.slane %v583, 5
      %v586 = vor.u32 %v582, %v585
      %v587 = vrot.slane %v586, 4
      %v589 = vshll.u32 %v250, 16
      %v591 = vrot.slane %v589, 5
      %v592 = vsel %vm266, %v587, %v591
      %v593 = vshrl.u32 %v250, 16
      %v595 = vrot.slane %v593, 4
      %v596 = vor.u32 %v595, %v591
      %v597 = vrot.slane %v596, 4
      %v599 = vshll.u32 %v251, 16
      %v601 = vrot.slane %v599, 5
      %v602 = vsel %vm266, %v597, %v601
      %v604 = vshrl.u32 %v252, 16
      %v606 = vrot.slane %v604, 4
      %v607 = vshll.u32 %v252, 16
      %v609 = vrot.slane %v607, 5
      %v610 = vor.u32 %v606, %v609
      %v611 = vrot.slane %v610, 4
      %v613 = vshll.u32 %v253, 16
      %v615 = vrot.slane %v613, 5
      %v616 = vsel %vm266, %v611, %v615
      %v617 = vshrl.u32 %v253, 16
      %v619 = vrot.slane %v617, 4
      %v620 = vor.u32 %v619, %v615
      %v621 = vrot.slane %v620, 4
      %v623 = vshll.u32 %v254, 16
      %v625 = vrot.slane %v623, 5
      %v626 = vsel %vm266, %v621, %v625
      %v628 = vshrl.u32 %v255, 16
      %v630 = vrot.slane %v628, 4
      %v631 = vshll.u32 %v255, 16
      %v633 = vrot.slane %v631, 5
      %v634 = vor.u32 %v630, %v633
      %v635 = vrot.slane %v634, 4
      %v637 = vshll.u32 %v256, 16
      %v639 = vrot.slane %v637, 5
      %v640 = vsel %vm266, %v635, %v639
      %v641 = vshrl.u32 %v256, 16
      %v643 = vrot.slane %v641, 4
      %v644 = vor.u32 %v643, %v639
      %v645 = vrot.slane %v644, 4
      %v647 = vshll.u32 %v257, 16
      %v649 = vrot.slane %v647, 5
      %v650 = vsel %vm266, %v645, %v649
      %vm699 = vcmask 1042432
      %vm700 = vcmask 1046532
      %vm701 = vmor %vm699, %vm700
      %v702 = vrot.slane %v210, 5
      %v703 = vrot.slane %v702, 4
      %v704 = vrot.slane %v211, 5
      %v705 = vsel %vm701, %v703, %v704
      %v706 = vrot.slane %v704, 4
      %v707 = vrot.slane %v212, 5
      %v708 = vsel %vm701, %v706, %v707
      %v709 = vrot.slane %v213, 5
      %v710 = vrot.slane %v709, 4
      %v711 = vrot.slane %v214, 5
      %v712 = vsel %vm701, %v710, %v711
      %v713 = vrot.slane %v711, 4
      %v714 = vrot.slane %v215, 5
      %v715 = vsel %vm701, %v713, %v714
      %v716 = vrot.slane %v216, 5
      %v717 = vrot.slane %v716, 4
      %v718 = vrot.slane %v217, 5
      %v719 = vsel %vm701, %v717, %v718
      %v720 = vrot.slane %v718, 4
      %v721 = vrot.slane %v218, 5
      %v722 = vsel %vm701, %v720, %v721
      %v723 = vrot.slane %v219, 5
      %v724 = vrot.slane %v723, 4
      %v725 = vrot.slane %v220, 5
      %v726 = vsel %vm701, %v724, %v725
      %v727 = vrot.slane %v725, 4
      %v728 = vrot.slane %v221, 5
      %v729 = vsel %vm701, %v727, %v728
      %v730 = vrot.slane %v222, 5
      %v731 = vrot.slane %v730, 4
      %v732 = vrot.slane %v223, 5
      %v733 = vsel %vm701, %v731, %v732
      %v734 = vrot.slane %v732, 4
      %v735 = vrot.slane %v224, 5
      %v736 = vsel %vm701, %v734, %v735
      %v737 = vrot.slane %v225, 5
      %v738 = vrot.slane %v737, 4
      %v739 = vrot.slane %v226, 5
      %v740 = vsel %vm701, %v738, %v739
      %v741 = vrot.slane %v739, 4
      %v742 = vrot.slane %v227, 5
      %v743 = vsel %vm701, %v741, %v742
      %v744 = vrot.slane %v228, 5
      %v745 = vrot.slane %v744, 4
      %v746 = vrot.slane %v229, 5
      %v747 = vsel %vm701, %v745, %v746
      %v748 = vrot.slane %v746, 4
      %v749 = vrot.slane %v230, 5
      %v750 = vsel %vm701, %v748, %v749
      %v751 = vrot.slane %v231, 5
      %v752 = vrot.slane %v751, 4
      %v753 = vrot.slane %v232, 5
      %v754 = vsel %vm701, %v752, %v753
      %v755 = vrot.slane %v753, 4
      %v756 = vrot.slane %v233, 5
      %v757 = vsel %vm701, %v755, %v756
      %v758 = vrot.slane %v234, 5
      %v759 = vrot.slane %v758, 4
      %v760 = vrot.slane %v235, 5
      %v761 = vsel %vm701, %v759, %v760
      %v762 = vrot.slane %v760, 4
      %v763 = vrot.slane %v236, 5
      %v764 = vsel %vm701, %v762, %v763
      %v765 = vrot.slane %v237, 5
      %v766 = vrot.slane %v765, 4
      %v767 = vrot.slane %v238, 5
      %v768 = vsel %vm701, %v766, %v767
      %v769 = vrot.slane %v767, 4
      %v770 = vrot.slane %v239, 5
      %v771 = vsel %vm701, %v769, %v770
      %v772 = vrot.slane %v240, 5
      %v773 = vrot.slane %v772, 4
      %v774 = vrot.slane %v241, 5
      %v775 = vsel %vm701, %v773, %v774
      %v776 = vrot.slane %v774, 4
      %v777 = vrot.slane %v242, 5
      %v778 = vsel %vm701, %v776, %v777
      %v779 = vrot.slane %v243, 5
      %v780 = vrot.slane %v779, 4
      %v781 = vrot.slane %v244, 5
      %v782 = vsel %vm701, %v780, %v781
      %v783 = vrot.slane %v781, 4
      %v784 = vrot.slane %v245, 5
      %v785 = vsel %vm701, %v783, %v784
      %v786 = vrot.slane %v246, 5
      %v787 = vrot.slane %v786, 4
      %v788 = vrot.slane %v247, 5
      %v789 = vsel %vm701, %v787, %v788
      %v790 = vrot.slane %v788, 4
      %v791 = vrot.slane %v248, 5
      %v792 = vsel %vm701, %v790, %v791
      %v793 = vrot.slane %v249, 5
      %v794 = vrot.slane %v793, 4
      %v795 = vrot.slane %v250, 5
      %v796 = vsel %vm701, %v794, %v795
      %v797 = vrot.slane %v795, 4
      %v798 = vrot.slane %v251, 5
      %v799 = vsel %vm701, %v797, %v798
      %v800 = vrot.slane %v252, 5
      %v801 = vrot.slane %v800, 4
      %v802 = vrot.slane %v253, 5
      %v803 = vsel %vm701, %v801, %v802
      %v804 = vrot.slane %v802, 4
      %v805 = vrot.slane %v254, 5
      %v806 = vsel %vm701, %v804, %v805
      %v807 = vrot.slane %v255, 5
      %v808 = vrot.slane %v807, 4
      %v809 = vrot.slane %v256, 5
      %v810 = vsel %vm701, %v808, %v809
      %v811 = vrot.slane %v809, 4
      %v812 = vrot.slane %v257, 5
      %v813 = vsel %vm701, %v811, %v812
      %v815 = vshrl.u32 %v258, 16
      %v817 = vrot.slane %v815, 4
      %v818 = vshll.u32 %v258, 16
      %v820 = vrot.slane %v818, 5
      %v821 = vor.u32 %v817, %v820
      %v822 = vrot.slane %v821, 4
      %v824 = vshll.u32 %v259, 16
      %v826 = vrot.slane %v824, 5
      %v827 = vsel %vm266, %v822, %v826
      %v828 = vshrl.u32 %v259, 16
      %v830 = vrot.slane %v828, 4
      %v831 = vor.u32 %v830, %v826
      %v832 = vrot.slane %v831, 4
      %v834 = vshll.u32 %v260, 16
      %v836 = vrot.slane %v834, 5
      %v837 = vsel %vm266, %v832, %v836
      %v841 = vrot.slane %v258, 5
      %v842 = vrot.slane %v841, 4
      %v843 = vrot.slane %v259, 5
      %v844 = vsel %vm701, %v842, %v843
      %v845 = vrot.slane %v843, 4
      %v846 = vrot.slane %v260, 5
      %v847 = vsel %vm701, %v845, %v846
      %v849 = vshrl.u32 %v261, 16
      %v851 = vrot.slane %v849, 4
      %v852 = vshll.u32 %v261, 16
      %v854 = vrot.slane %v852, 5
      %v855 = vor.u32 %v851, %v854
      %v856 = vrot.slane %v855, 4
      %v858 = vshll.u32 %v262, 16
      %v860 = vrot.slane %v858, 5
      %v861 = vsel %vm266, %v856, %v860
      %v862 = vshrl.u32 %v262, 16
      %v864 = vrot.slane %v862, 4
      %v865 = vor.u32 %v864, %v860
      %v866 = vrot.slane %v865, 4
      %v868 = vshll.u32 %v263, 16
      %v870 = vrot.slane %v868, 5
      %v871 = vsel %vm266, %v866, %v870
      %v875 = vrot.slane %v261, 5
      %v876 = vrot.slane %v875, 4
      %v877 = vrot.slane %v262, 5
      %v878 = vsel %vm701, %v876, %v877
      %v879 = vrot.slane %v877, 4
      %v880 = vrot.slane %v263, 5
      %v881 = vsel %vm701, %v879, %v880
      %v882 = vunpack.c.l.b16 %v210
      %v883 = vunpack.c.l.b16 %v211
      %v884 = vunpack.c.l.b16 %v213
      %v885 = vunpack.c.l.b16 %v214
      %v886 = vunpack.c.l.b16 %v216
      %v887 = vunpack.c.l.b16 %v217
      %v888 = vunpack.c.l.b16 %v219
      %v889 = vunpack.c.l.b16 %v220
      %v890 = vunpack.c.l.b16 %v222
      %v891 = vunpack.c.l.b16 %v223
      %v892 = vunpack.c.l.b16 %v225
      %v893 = vunpack.c.l.b16 %v226
      %v894 = vunpack.c.l.b16 %v228
      %v895 = vunpack.c.l.b16 %v229
      %v896 = vunpack.c.l.b16 %v231
      %v897 = vunpack.c.l.b16 %v232
      %v898 = vunpack.c.l.b16 %v234
      %v899 = vunpack.c.l.b16 %v235
      %v900 = vunpack.c.l.b16 %v237
      %v901 = vunpack.c.l.b16 %v238
      %v902 = vunpack.c.l.b16 %v240
      %v903 = vunpack.c.l.b16 %v241
      %v904 = vunpack.c.l.b16 %v243
      %v905 = vunpack.c.l.b16 %v244
      %v906 = vunpack.c.l.b16 %v246
      %v907 = vunpack.c.l.b16 %v247
      %v908 = vunpack.c.l.b16 %v249
      %v909 = vunpack.c.l.b16 %v250
      %v910 = vunpack.c.l.b16 %v252
      %v911 = vunpack.c.l.b16 %v253
      %v912 = vunpack.c.l.b16 %v255
      %v913 = vunpack.c.l.b16 %v256
      %v914 = vpack.c.b16 %v883, %v882
      %v915 = vpack.c.b16 %v885, %v884
      %v916 = vpack.c.b16 %v887, %v886
      %v917 = vpack.c.b16 %v889, %v888
      %v918 = vpack.c.b16 %v891, %v890
      %v919 = vpack.c.b16 %v893, %v892
      %v920 = vpack.c.b16 %v895, %v894
      %v921 = vpack.c.b16 %v897, %v896
      %v922 = vpack.c.b16 %v899, %v898
      %v923 = vpack.c.b16 %v901, %v900
      %v924 = vpack.c.b16 %v903, %v902
      %v925 = vpack.c.b16 %v905, %v904
      %v926 = vpack.c.b16 %v907, %v906
      %v927 = vpack.c.b16 %v909, %v908
      %v928 = vpack.c.b16 %v911, %v910
      %v929 = vpack.c.b16 %v913, %v912
      %v946 = vunpack.c.l.b16 %v280
      %v947 = vunpack.c.l.b16 %v290
      %v948 = vunpack.c.l.b16 %v304
      %v949 = vunpack.c.l.b16 %v314
      %v950 = vunpack.c.l.b16 %v328
      %v951 = vunpack.c.l.b16 %v338
      %v952 = vunpack.c.l.b16 %v352
      %v953 = vunpack.c.l.b16 %v362
      %v954 = vunpack.c.l.b16 %v376
      %v955 = vunpack.c.l.b16 %v386
      %v956 = vunpack.c.l.b16 %v400
      %v957 = vunpack.c.l.b16 %v410
      %v958 = vunpack.c.l.b16 %v424
      %v959 = vunpack.c.l.b16 %v434
      %v960 = vunpack.c.l.b16 %v448
      %v961 = vunpack.c.l.b16 %v458
      %v962 = vunpack.c.l.b16 %v472
      %v963 = vunpack.c.l.b16 %v482
      %v964 = vunpack.c.l.b16 %v496
      %v965 = vunpack.c.l.b16 %v506
      %v966 = vunpack.c.l.b16 %v520
      %v967 = vunpack.c.l.b16 %v530
      %v968 = vunpack.c.l.b16 %v544
      %v969 = vunpack.c.l.b16 %v554
      %v970 = vunpack.c.l.b16 %v568
      %v971 = vunpack.c.l.b16 %v578
      %v972 = vunpack.c.l.b16 %v592
      %v973 = vunpack.c.l.b16 %v602
      %v974 = vunpack.c.l.b16 %v616
      %v975 = vunpack.c.l.b16 %v626
      %v976 = vunpack.c.l.b16 %v640
      %v977 = vunpack.c.l.b16 %v650
      %v978 = vpack.c.b16 %v947, %v946
      %v979 = vpack.c.b16 %v949, %v948
      %v980 = vpack.c.b16 %v951, %v950
      %v981 = vpack.c.b16 %v953, %v952
      %v982 = vpack.c.b16 %v955, %v954
      %v983 = vpack.c.b16 %v957, %v956
      %v984 = vpack.c.b16 %v959, %v958
      %v985 = vpack.c.b16 %v961, %v960
      %v986 = vpack.c.b16 %v963, %v962
      %v987 = vpack.c.b16 %v965, %v964
      %v988 = vpack.c.b16 %v967, %v966
      %v989 = vpack.c.b16 %v969, %v968
      %v990 = vpack.c.b16 %v971, %v970
      %v991 = vpack.c.b16 %v973, %v972
      %v992 = vpack.c.b16 %v975, %v974
      %v993 = vpack.c.b16 %v977, %v976
      %v1010 = vunpack.c.l.b16 %v705
      %v1011 = vunpack.c.l.b16 %v708
      %v1012 = vunpack.c.l.b16 %v712
      %v1013 = vunpack.c.l.b16 %v715
      %v1014 = vunpack.c.l.b16 %v719
      %v1015 = vunpack.c.l.b16 %v722
      %v1016 = vunpack.c.l.b16 %v726
      %v1017 = vunpack.c.l.b16 %v729
      %v1018 = vunpack.c.l.b16 %v733
      %v1019 = vunpack.c.l.b16 %v736
      %v1020 = vunpack.c.l.b16 %v740
      %v1021 = vunpack.c.l.b16 %v743
      %v1022 = vunpack.c.l.b16 %v747
      %v1023 = vunpack.c.l.b16 %v750
      %v1024 = vunpack.c.l.b16 %v754
      %v1025 = vunpack.c.l.b16 %v757
      %v1026 = vunpack.c.l.b16 %v761
      %v1027 = vunpack.c.l.b16 %v764
      %v1028 = vunpack.c.l.b16 %v768
      %v1029 = vunpack.c.l.b16 %v771
      %v1030 = vunpack.c.l.b16 %v775
      %v1031 = vunpack.c.l.b16 %v778
      %v1032 = vunpack.c.l.b16 %v782
      %v1033 = vunpack.c.l.b16 %v785
      %v1034 = vunpack.c.l.b16 %v789
      %v1035 = vunpack.c.l.b16 %v792
      %v1036 = vunpack.c.l.b16 %v796
      %v1037 = vunpack.c.l.b16 %v799
      %v1038 = vunpack.c.l.b16 %v803
      %v1039 = vunpack.c.l.b16 %v806
      %v1040 = vunpack.c.l.b16 %v810
      %v1041 = vunpack.c.l.b16 %v813
      %v1042 = vpack.c.b16 %v1011, %v1010
      %v1043 = vpack.c.b16 %v1013, %v1012
      %v1044 = vpack.c.b16 %v1015, %v1014
      %v1045 = vpack.c.b16 %v1017, %v1016
      %v1046 = vpack.c.b16 %v1019, %v1018
      %v1047 = vpack.c.b16 %v1021, %v1020
      %v1048 = vpack.c.b16 %v1023, %v1022
      %v1049 = vpack.c.b16 %v1025, %v1024
      %v1050 = vpack.c.b16 %v1027, %v1026
      %v1051 = vpack.c.b16 %v1029, %v1028
      %v1052 = vpack.c.b16 %v1031, %v1030
      %v1053 = vpack.c.b16 %v1033, %v1032
      %v1054 = vpack.c.b16 %v1035, %v1034
      %v1055 = vpack.c.b16 %v1037, %v1036
      %v1056 = vpack.c.b16 %v1039, %v1038
      %v1057 = vpack.c.b16 %v1041, %v1040
      %v1074 = vunpack.c.l.b16 %v258
      %v1075 = vunpack.c.l.b16 %v259
      %v1076 = vpack.c.b16 %v1075, %v1074
      %v1078 = vunpack.c.l.b16 %v827
      %v1079 = vunpack.c.l.b16 %v837
      %v1080 = vpack.c.b16 %v1079, %v1078
      %v1082 = vunpack.c.l.b16 %v844
      %v1083 = vunpack.c.l.b16 %v847
      %v1084 = vpack.c.b16 %v1083, %v1082
      %v1086 = vunpack.c.l.b16 %v261
      %v1087 = vunpack.c.l.b16 %v262
      %v1088 = vpack.c.b16 %v1087, %v1086
      %v1090 = vunpack.c.l.b16 %v861
      %v1091 = vunpack.c.l.b16 %v871
      %v1092 = vpack.c.b16 %v1091, %v1090
      %v1094 = vunpack.c.l.b16 %v878
      %v1095 = vunpack.c.l.b16 %v881
      %v1096 = vpack.c.b16 %v1095, %v1094
      %v1098 = vld [vmem:[%s1] sm:$0xf]
      %v1099 = vld [vmem:[%s1 + $0x4] sm:$0xf]
      %v1100 = vld [vmem:[%s1 + $0x8] sm:$0xf]
      %v1101 = vld [vmem:[%s1 + $0xc] sm:$0xf]
      %v1102 = vld [vmem:[%s1 + $0x10] sm:$0xf]
      %v1103 = vld [vmem:[%s1 + $0x14] sm:$0xf]
      %v1104 = vld [vmem:[%s1 + $0x18] sm:$0xf]
      %v1105 = vld [vmem:[%s1 + $0x1c] sm:$0xf]
      %v1106 = vld [vmem:[%s1 + $0x20] sm:$0xf]
      %v1107 = vld [vmem:[%s1 + $0x24] sm:$0xf]
      %v1108 = vld [vmem:[%s1 + $0x28] sm:$0xf]
      %v1109 = vld [vmem:[%s1 + $0x2c] sm:$0xf]
      %v1110 = vld [vmem:[%s1 + $0x30] sm:$0xf]
      %v1111 = vld [vmem:[%s1 + $0x34] sm:$0xf]
      %v1112 = vld [vmem:[%s1 + $0x38] sm:$0xf]
      %v1113 = vld [vmem:[%s1 + $0x3c] sm:$0xf]
      %v1114 = vld [vmem:[%s1 + $0x40] sm:$0xf]
      %v1115 = vld [vmem:[%s1 + $0x44] sm:$0xf]
      %v1116 = vld [vmem:[%s1 + $0x48] sm:$0xf]
      %v1117 = vld [vmem:[%s1 + $0x4c] sm:$0xf]
      %v1118 = vld [vmem:[%s1 + $0x50] sm:$0xf]
      %v1119 = vld [vmem:[%s1 + $0x54] sm:$0xf]
      %v1120 = vld [vmem:[%s1 + $0x58] sm:$0xf]
      %v1121 = vld [vmem:[%s1 + $0x5c] sm:$0xf]
      %v1122 = vld [vmem:[%s1 + $0x60] sm:$0xf]
      %v1123 = vld [vmem:[%s1 + $0x64] sm:$0xf]
      %v1124 = vld [vmem:[%s1 + $0x68] sm:$0xf]
      %v1125 = vld [vmem:[%s1 + $0x6c] sm:$0xf]
      %v1126 = vld [vmem:[%s1 + $0x70] sm:$0xf]
      %v1127 = vld [vmem:[%s1 + $0x74] sm:$0xf]
      %v1128 = vld [vmem:[%s1 + $0x78] sm:$0xf]
      %v1129 = vld [vmem:[%s1 + $0x7c] sm:$0xf]
      %v1130 = vld [vmem:[%s1 + $0x80] sm:$0xf]
      %v1131 = vld [vmem:[%s1 + $0x84] sm:$0xf]
      %v1132 = vld [vmem:[%s1 + $0x88] sm:$0xf]
      %v1133 = vld [vmem:[%s1 + $0x8c] sm:$0xf]
      %v1134 = vld [vmem:[%s1 + $0x90] sm:$0xf]
      %v1135 = vld [vmem:[%s1 + $0x94] sm:$0xf]
      %v1136 = vld [vmem:[%s1 + $0x98] sm:$0xf]
      %v1137 = vld [vmem:[%s1 + $0x9c] sm:$0xf]
      %v1138 = vld [vmem:[%s1 + $0xa0] sm:$0xf]
      %v1139 = vld [vmem:[%s1 + $0xa4] sm:$0xf]
      %v1140 = vld [vmem:[%s1 + $0xa8] sm:$0xf]
      %v1141 = vld [vmem:[%s1 + $0xac] sm:$0xf]
      %v1142 = vld [vmem:[%s1 + $0xb0] sm:$0xf]
      %v1143 = vld [vmem:[%s1 + $0xb4] sm:$0xf]
      %v1144 = vld [vmem:[%s1 + $0xb8] sm:$0xf]
      %v1145 = vld [vmem:[%s1 + $0xbc] sm:$0xf]
      %v1146 = vld [vmem:[%s1 + $0xc0] sm:$0xf]
      %v1147 = vld [vmem:[%s1 + $0xc4] sm:$0xf]
      %v1148 = vld [vmem:[%s1 + $0xc8] sm:$0xf]
      %v1149 = vld [vmem:[%s1 + $0xcc] sm:$0xf]
      %v1150 = vld [vmem:[%s1 + $0xd0] sm:$0xf]
      %v1151 = vld [vmem:[%s1 + $0xd4] sm:$0xf]
      %v1152 = vld [vmem:[%s1 + $0xd8] sm:$0xf]
      %v1153 = vld [vmem:[%s1 + $0xdc] sm:$0xf]
      %v1154 = vld [vmem:[%s1 + $0xe0] sm:$0xf]
      %v1155 = vld [vmem:[%s1 + $0xe4] sm:$0xf]
      %v1156 = vld [vmem:[%s1 + $0xe8] sm:$0xf]
      %v1157 = vld [vmem:[%s1 + $0xec] sm:$0xf]
      %v1158 = vld [vmem:[%s1 + $0xf0] sm:$0xf]
      %v1159 = vld [vmem:[%s1 + $0xf4] sm:$0xf]
      %v1160 = vld [vmem:[%s1 + $0xf8] sm:$0xf]
      %v1161 = vld [vmem:[%s1 + $0xfc] sm:$0xf]
      %v1162 = vld [vmem:[%s1 + $0x100] sm:$0xf]
      %v1163 = vld [vmem:[%s1 + $0x104] sm:$0xf]
      %v1164 = vld [vmem:[%s1 + $0x108] sm:$0xf]
      %v1165 = vld [vmem:[%s1 + $0x10c] sm:$0xf]
      %v1166 = vld [vmem:[%s1 + $0x110] sm:$0xf]
      %v1167 = vld [vmem:[%s1 + $0x114] sm:$0xf]
      %v1168 = vld [vmem:[%s1 + $0x118] sm:$0xf]
      %v1169 = vld [vmem:[%s1 + $0x11c] sm:$0xf]
      %v1170 = vld [vmem:[%s1 + $0x120] sm:$0xf]
      %v1171 = vld [vmem:[%s1 + $0x124] sm:$0xf]
      %v1172 = vld [vmem:[%s1 + $0x128] sm:$0xf]
      %v1173 = vld [vmem:[%s1 + $0x12c] sm:$0xf]
      %v1174 = vld [vmem:[%s1 + $0x130] sm:$0xf]
      %v1175 = vld [vmem:[%s1 + $0x134] sm:$0xf]
      %v1176 = vld [vmem:[%s1 + $0x138] sm:$0xf]
      %v1177 = vld [vmem:[%s1 + $0x13c] sm:$0xf]
      %v1178 = vld [vmem:[%s1 + $0x140] sm:$0xf]
      %v1179 = vld [vmem:[%s1 + $0x144] sm:$0xf]
      %v1180 = vld [vmem:[%s1 + $0x148] sm:$0xf]
      %v1181 = vld [vmem:[%s1 + $0x14c] sm:$0xf]
      %v1182 = vld [vmem:[%s1 + $0x150] sm:$0xf]
      %v1183 = vld [vmem:[%s1 + $0x154] sm:$0xf]
      %v1184 = vld [vmem:[%s1 + $0x158] sm:$0xf]
      %v1185 = vld [vmem:[%s1 + $0x15c] sm:$0xf]
      %v1186 = vld [vmem:[%s1 + $0x160] sm:$0xf]
      %v1187 = vld [vmem:[%s1 + $0x164] sm:$0xf]
      %v1188 = vld [vmem:[%s1 + $0x168] sm:$0xf]
      %v1189 = vld [vmem:[%s1 + $0x16c] sm:$0xf]
      %v1190 = vld [vmem:[%s1 + $0x170] sm:$0xf]
      %v1191 = vld [vmem:[%s1 + $0x174] sm:$0xf]
      %v1192 = vld [vmem:[%s1 + $0x178] sm:$0xf]
      %v1193 = vld [vmem:[%s1 + $0x17c] sm:$0xf]
      %v1194 = vld [vmem:[%s1 + $0x180] sm:$0xf]
      %v1195 = vld [vmem:[%s1 + $0x184] sm:$0xf]
      %v1196 = vld [vmem:[%s1 + $0x188] sm:$0xf]
      %v1197 = vld [vmem:[%s1 + $0x18c] sm:$0xf]
      %v1198 = vld [vmem:[%s1 + $0x190] sm:$0xf]
      %v1199 = vld [vmem:[%s1 + $0x194] sm:$0xf]
      %v1200 = vld [vmem:[%s1 + $0x198] sm:$0xf]
      %v1201 = vld [vmem:[%s1 + $0x19c] sm:$0xf]
      %v1202 = vld [vmem:[%s1 + $0x1a0] sm:$0xf]
      %v1203 = vld [vmem:[%s1 + $0x1a4] sm:$0xf]
      %v1204 = vld [vmem:[%s1 + $0x1a8] sm:$0xf]
      %v1205 = vld [vmem:[%s1 + $0x1ac] sm:$0xf]
      %v1206 = vld [vmem:[%s1 + $0x1b0] sm:$0xf]
      %v1207 = vld [vmem:[%s1 + $0x1b4] sm:$0xf]
      %v1208 = vld [vmem:[%s1 + $0x1b8] sm:$0xf]
      %v1209 = vld [vmem:[%s1 + $0x1bc] sm:$0xf]
      %v1210 = vld [vmem:[%s1 + $0x1c0] sm:$0xf]
      %v1211 = vld [vmem:[%s1 + $0x1c4] sm:$0xf]
      %v1212 = vld [vmem:[%s1 + $0x1c8] sm:$0xf]
      %v1213 = vld [vmem:[%s1 + $0x1cc] sm:$0xf]
      %v1214 = vld [vmem:[%s1 + $0x1d0] sm:$0xf]
      %v1215 = vld [vmem:[%s1 + $0x1d4] sm:$0xf]
      %v1216 = vld [vmem:[%s1 + $0x1d8] sm:$0xf]
      %v1217 = vld [vmem:[%s1 + $0x1dc] sm:$0xf]
      %v1218 = vld [vmem:[%s1 + $0x1e0] sm:$0xf]
      %v1219 = vld [vmem:[%s1 + $0x1e4] sm:$0xf]
      %v1220 = vld [vmem:[%s1 + $0x1e8] sm:$0xf]
      %v1221 = vld [vmem:[%s1 + $0x1ec] sm:$0xf]
      %v1222 = vld [vmem:[%s1 + $0x1f0] sm:$0xf]
      %v1223 = vld [vmem:[%s1 + $0x1f4] sm:$0xf]
      %v1224 = vld [vmem:[%s1 + $0x1f8] sm:$0xf]
      %v1225 = vld [vmem:[%s1 + $0x1fc] sm:$0xf]
      %v1226 = vld [vmem:[%s1 + $0x200] sm:$0xf]
      %v1227 = vld [vmem:[%s1 + $0x204] sm:$0xf]
      %v1228 = vld [vmem:[%s1 + $0x208] sm:$0xf]
      %v1229 = vld [vmem:[%s1 + $0x20c] sm:$0xf]
      %v1230 = vld [vmem:[%s1 + $0x210] sm:$0xf]
      %v1231 = vld [vmem:[%s1 + $0x214] sm:$0xf]
      %v1232 = vld [vmem:[%s1 + $0x218] sm:$0xf]
      %v1233 = vld [vmem:[%s1 + $0x21c] sm:$0xf]
      %v1234 = vld [vmem:[%s1 + $0x220] sm:$0xf]
      %v1235 = vld [vmem:[%s1 + $0x224] sm:$0xf]
      %v1236 = vld [vmem:[%s1 + $0x228] sm:$0xf]
      %v1237 = vld [vmem:[%s1 + $0x22c] sm:$0xf]
      %v1238 = vld [vmem:[%s1 + $0x230] sm:$0xf]
      %v1239 = vld [vmem:[%s1 + $0x234] sm:$0xf]
      %v1240 = vld [vmem:[%s1 + $0x238] sm:$0xf]
      %v1241 = vld [vmem:[%s1 + $0x23c] sm:$0xf]
      %v1242 = vld [vmem:[%s2] sm:$0x1]
      %v1244 = vlaneseq
      %v1245 = vshrl.u32 %v1244, 7
      %v1246 = vsub.s32 0, %v1245
      %v1247 = vrot.slane %v1242, %v1246
      %v1393 = vunpack.c.l.b16 %v1098
      %v1394 = vunpack.c.l.b16 %v1099
      %v1395 = vunpack.c.l.b16 %v1100
      %v1396 = vunpack.c.l.b16 %v1101
      %v1397 = vunpack.c.l.b16 %v1102
      %v1398 = vunpack.c.l.b16 %v1103
      %v1399 = vunpack.c.l.b16 %v1104
      %v1400 = vunpack.c.l.b16 %v1105
      %v1401 = vunpack.c.l.b16 %v1106
      %v1402 = vunpack.c.l.b16 %v1107
      %v1403 = vunpack.c.l.b16 %v1108
      %v1404 = vunpack.c.l.b16 %v1109
      %v1405 = vunpack.c.l.b16 %v1110
      %v1406 = vunpack.c.l.b16 %v1111
      %v1407 = vunpack.c.l.b16 %v1112
      %v1408 = vunpack.c.l.b16 %v1113
      %v1409 = vunpack.c.l.b16 %v1114
      %v1410 = vunpack.c.l.b16 %v1115
      %v1411 = vunpack.c.l.b16 %v1116
      %v1412 = vunpack.c.l.b16 %v1117
      %v1413 = vunpack.c.l.b16 %v1118
      %v1414 = vunpack.c.l.b16 %v1119
      %v1415 = vunpack.c.l.b16 %v1120
      %v1416 = vunpack.c.l.b16 %v1121
      %v1417 = vunpack.c.l.b16 %v1122
      %v1418 = vunpack.c.l.b16 %v1123
      %v1419 = vunpack.c.l.b16 %v1124
      %v1420 = vunpack.c.l.b16 %v1125
      %v1421 = vunpack.c.l.b16 %v1126
      %v1422 = vunpack.c.l.b16 %v1127
      %v1423 = vunpack.c.l.b16 %v1128
      %v1424 = vunpack.c.l.b16 %v1129
      %v1425 = vunpack.c.l.b16 %v1130
      %v1426 = vunpack.c.l.b16 %v1131
      %v1427 = vunpack.c.l.b16 %v1132
      %v1428 = vunpack.c.l.b16 %v1133
      %v1429 = vunpack.c.l.b16 %v1134
      %v1430 = vunpack.c.l.b16 %v1135
      %v1431 = vunpack.c.l.b16 %v1136
      %v1432 = vunpack.c.l.b16 %v1137
      %v1433 = vunpack.c.l.b16 %v1138
      %v1434 = vunpack.c.l.b16 %v1139
      %v1435 = vunpack.c.l.b16 %v1140
      %v1436 = vunpack.c.l.b16 %v1141
      %v1437 = vunpack.c.l.b16 %v1142
      %v1438 = vunpack.c.l.b16 %v1143
      %v1439 = vunpack.c.l.b16 %v1144
      %v1440 = vunpack.c.l.b16 %v1145
      %v1441 = vunpack.c.l.b16 %v1146
      %v1442 = vunpack.c.l.b16 %v1147
      %v1443 = vunpack.c.l.b16 %v1148
      %v1444 = vunpack.c.l.b16 %v1149
      %v1445 = vunpack.c.l.b16 %v1150
      %v1446 = vunpack.c.l.b16 %v1151
      %v1447 = vunpack.c.l.b16 %v1152
      %v1448 = vunpack.c.l.b16 %v1153
      %v1449 = vunpack.c.l.b16 %v1154
      %v1450 = vunpack.c.l.b16 %v1155
      %v1451 = vunpack.c.l.b16 %v1156
      %v1452 = vunpack.c.l.b16 %v1157
      %v1453 = vunpack.c.l.b16 %v1158
      %v1454 = vunpack.c.l.b16 %v1159
      %v1455 = vunpack.c.l.b16 %v1160
      %v1456 = vunpack.c.l.b16 %v1161
      %v1457 = vunpack.c.l.b16 %v1162
      %v1458 = vunpack.c.l.b16 %v1163
      %v1459 = vunpack.c.l.b16 %v1164
      %v1460 = vunpack.c.l.b16 %v1165
      %v1461 = vunpack.c.l.b16 %v1166
      %v1462 = vunpack.c.l.b16 %v1167
      %v1463 = vunpack.c.l.b16 %v1168
      %v1464 = vunpack.c.l.b16 %v1169
      %v1465 = vunpack.c.l.b16 %v1170
      %v1466 = vunpack.c.l.b16 %v1171
      %v1467 = vunpack.c.l.b16 %v1172
      %v1468 = vunpack.c.l.b16 %v1173
      %v1469 = vunpack.c.l.b16 %v1174
      %v1470 = vunpack.c.l.b16 %v1175
      %v1471 = vunpack.c.l.b16 %v1176
      %v1472 = vunpack.c.l.b16 %v1177
      %v1473 = vunpack.c.l.b16 %v1178
      %v1474 = vunpack.c.l.b16 %v1179
      %v1475 = vunpack.c.l.b16 %v1180
      %v1476 = vunpack.c.l.b16 %v1181
      %v1477 = vunpack.c.l.b16 %v1182
      %v1478 = vunpack.c.l.b16 %v1183
      %v1479 = vunpack.c.l.b16 %v1184
      %v1480 = vunpack.c.l.b16 %v1185
      %v1481 = vunpack.c.l.b16 %v1186
      %v1482 = vunpack.c.l.b16 %v1187
      %v1483 = vunpack.c.l.b16 %v1188
      %v1484 = vunpack.c.l.b16 %v1189
      %v1485 = vunpack.c.l.b16 %v1190
      %v1486 = vunpack.c.l.b16 %v1191
      %v1487 = vunpack.c.l.b16 %v1192
      %v1488 = vunpack.c.l.b16 %v1193
      %v1489 = vunpack.c.l.b16 %v1194
      %v1490 = vunpack.c.l.b16 %v1195
      %v1491 = vunpack.c.l.b16 %v1196
      %v1492 = vunpack.c.l.b16 %v1197
      %v1493 = vunpack.c.l.b16 %v1198
      %v1494 = vunpack.c.l.b16 %v1199
      %v1495 = vunpack.c.l.b16 %v1200
      %v1496 = vunpack.c.l.b16 %v1201
      %v1497 = vunpack.c.l.b16 %v1202
      %v1498 = vunpack.c.l.b16 %v1203
      %v1499 = vunpack.c.l.b16 %v1204
      %v1500 = vunpack.c.l.b16 %v1205
      %v1501 = vunpack.c.l.b16 %v1206
      %v1502 = vunpack.c.l.b16 %v1207
      %v1503 = vunpack.c.l.b16 %v1208
      %v1504 = vunpack.c.l.b16 %v1209
      %v1505 = vunpack.c.l.b16 %v1210
      %v1506 = vunpack.c.l.b16 %v1211
      %v1507 = vunpack.c.l.b16 %v1212
      %v1508 = vunpack.c.l.b16 %v1213
      %v1509 = vunpack.c.l.b16 %v1214
      %v1510 = vunpack.c.l.b16 %v1215
      %v1511 = vunpack.c.l.b16 %v1216
      %v1512 = vunpack.c.l.b16 %v1217
      %v1513 = vunpack.c.l.b16 %v1218
      %v1514 = vunpack.c.l.b16 %v1219
      %v1515 = vunpack.c.l.b16 %v1220
      %v1516 = vunpack.c.l.b16 %v1221
      %v1517 = vunpack.c.l.b16 %v1222
      %v1518 = vunpack.c.l.b16 %v1223
      %v1519 = vunpack.c.l.b16 %v1224
      %v1520 = vunpack.c.l.b16 %v1225
      %v1521 = vunpack.c.l.b16 %v1226
      %v1522 = vunpack.c.l.b16 %v1227
      %v1523 = vunpack.c.l.b16 %v1228
      %v1524 = vunpack.c.l.b16 %v1229
      %v1525 = vunpack.c.l.b16 %v1230
      %v1526 = vunpack.c.l.b16 %v1231
      %v1527 = vunpack.c.l.b16 %v1232
      %v1528 = vunpack.c.l.b16 %v1233
      %v1529 = vunpack.c.l.b16 %v1234
      %v1530 = vunpack.c.l.b16 %v1235
      %v1531 = vunpack.c.l.b16 %v1236
      %v1532 = vunpack.c.l.b16 %v1237
      %v1533 = vunpack.c.l.b16 %v1238
      %v1534 = vunpack.c.l.b16 %v1239
      %v1535 = vunpack.c.l.b16 %v1240
      %v1536 = vunpack.c.l.b16 %v1241
      %v1537 = vpack.c.b16 %v1394, %v1393
      %v1538 = vpack.c.b16 %v1396, %v1395
      %v1539 = vpack.c.b16 %v1398, %v1397
      %v1540 = vpack.c.b16 %v1400, %v1399
      %v1541 = vpack.c.b16 %v1402, %v1401
      %v1542 = vpack.c.b16 %v1404, %v1403
      %v1543 = vpack.c.b16 %v1406, %v1405
      %v1544 = vpack.c.b16 %v1408, %v1407
      %v1545 = vpack.c.b16 %v1410, %v1409
      %v1546 = vpack.c.b16 %v1412, %v1411
      %v1547 = vpack.c.b16 %v1414, %v1413
      %v1548 = vpack.c.b16 %v1416, %v1415
      %v1549 = vpack.c.b16 %v1418, %v1417
      %v1550 = vpack.c.b16 %v1420, %v1419
      %v1551 = vpack.c.b16 %v1422, %v1421
      %v1552 = vpack.c.b16 %v1424, %v1423
      %v1553 = vpack.c.b16 %v1426, %v1425
      %v1554 = vpack.c.b16 %v1428, %v1427
      %v1555 = vpack.c.b16 %v1430, %v1429
      %v1556 = vpack.c.b16 %v1432, %v1431
      %v1557 = vpack.c.b16 %v1434, %v1433
      %v1558 = vpack.c.b16 %v1436, %v1435
      %v1559 = vpack.c.b16 %v1438, %v1437
      %v1560 = vpack.c.b16 %v1440, %v1439
      %v1561 = vpack.c.b16 %v1442, %v1441
      %v1562 = vpack.c.b16 %v1444, %v1443
      %v1563 = vpack.c.b16 %v1446, %v1445
      %v1564 = vpack.c.b16 %v1448, %v1447
      %v1565 = vpack.c.b16 %v1450, %v1449
      %v1566 = vpack.c.b16 %v1452, %v1451
      %v1567 = vpack.c.b16 %v1454, %v1453
      %v1568 = vpack.c.b16 %v1456, %v1455
      %v1569 = vpack.c.b16 %v1458, %v1457
      %v1570 = vpack.c.b16 %v1460, %v1459
      %v1571 = vpack.c.b16 %v1462, %v1461
      %v1572 = vpack.c.b16 %v1464, %v1463
      %v1573 = vpack.c.b16 %v1466, %v1465
      %v1574 = vpack.c.b16 %v1468, %v1467
      %v1575 = vpack.c.b16 %v1470, %v1469
      %v1576 = vpack.c.b16 %v1472, %v1471
      %v1577 = vpack.c.b16 %v1474, %v1473
      %v1578 = vpack.c.b16 %v1476, %v1475
      %v1579 = vpack.c.b16 %v1478, %v1477
      %v1580 = vpack.c.b16 %v1480, %v1479
      %v1581 = vpack.c.b16 %v1482, %v1481
      %v1582 = vpack.c.b16 %v1484, %v1483
      %v1583 = vpack.c.b16 %v1486, %v1485
      %v1584 = vpack.c.b16 %v1488, %v1487
      %v1585 = vpack.c.b16 %v1490, %v1489
      %v1586 = vpack.c.b16 %v1492, %v1491
      %v1587 = vpack.c.b16 %v1494, %v1493
      %v1588 = vpack.c.b16 %v1496, %v1495
      %v1589 = vpack.c.b16 %v1498, %v1497
      %v1590 = vpack.c.b16 %v1500, %v1499
      %v1591 = vpack.c.b16 %v1502, %v1501
      %v1592 = vpack.c.b16 %v1504, %v1503
      %v1593 = vpack.c.b16 %v1506, %v1505
      %v1594 = vpack.c.b16 %v1508, %v1507
      %v1595 = vpack.c.b16 %v1510, %v1509
      %v1596 = vpack.c.b16 %v1512, %v1511
      %v1597 = vpack.c.b16 %v1514, %v1513
      %v1598 = vpack.c.b16 %v1516, %v1515
      %v1599 = vpack.c.b16 %v1518, %v1517
      %v1600 = vpack.c.b16 %v1520, %v1519
      %v1601 = vpack.c.b16 %v1522, %v1521
      %v1602 = vpack.c.b16 %v1524, %v1523
      %v1603 = vpack.c.b16 %v1526, %v1525
      %v1604 = vpack.c.b16 %v1528, %v1527
      %v1605 = vpack.c.b16 %v1530, %v1529
      %v1606 = vpack.c.b16 %v1532, %v1531
      %v1607 = vpack.c.b16 %v1534, %v1533
      %v1608 = vpack.c.b16 %v1536, %v1535
      %1681 = vmatprep.subr.bf16.mxu0 0
      %1682 = vmatpush1.bf16.msra.mxu0 %v1544
      %1683 = vmatprep.subr.bf16.mxu0 0
      %1684 = vmatpush1.bf16.msra.mxu0 %v1543
      %1685 = vmatprep.subr.bf16.mxu0 0
      %1686 = vmatpush1.bf16.msra.mxu0 %v1542
      %1687 = vmatprep.subr.bf16.mxu0 0
      %1688 = vmatpush1.bf16.msra.mxu0 %v1541
      %1689 = vmatprep.subr.bf16.mxu0 0
      %1690 = vmatpush1.bf16.msra.mxu0 %v1540
      %1691 = vmatprep.subr.bf16.mxu0 0
      %1692 = vmatpush1.bf16.msra.mxu0 %v1539
      %1693 = vmatprep.subr.bf16.mxu0 0
      %1694 = vmatpush1.bf16.msra.mxu0 %v1538
      %1695 = vmatprep.subr.bf16.mxu0 0
      %1696 = vmatpush1.bf16.msra.mxu0 %v1537
      %1697 = vmatprep.subr.bf16.mxu0 0
      %1698 = vmatpush2.bf16.msra.mxu0 %v1552
      %1699 = vmatprep.subr.bf16.mxu0 0
      %1700 = vmatpush2.bf16.msra.mxu0 %v1551
      %1701 = vmatprep.subr.bf16.mxu0 0
      %1702 = vmatpush2.bf16.msra.mxu0 %v1550
      %1703 = vmatprep.subr.bf16.mxu0 0
      %1704 = vmatpush2.bf16.msra.mxu0 %v1549
      %1705 = vmatprep.subr.bf16.mxu0 0
      %1706 = vmatpush2.bf16.msra.mxu0 %v1548
      %1707 = vmatprep.subr.bf16.mxu0 0
      %1708 = vmatpush2.bf16.msra.mxu0 %v1547
      %1709 = vmatprep.subr.bf16.mxu0 0
      %1710 = vmatpush2.bf16.msra.mxu0 %v1546
      %1711 = vmatprep.subr.bf16.mxu0 0
      %1712 = vmatpush2.bf16.msra.mxu0 %v1545
      %1713 = vmatprep.mubr.bf16.mxu0 %v978
      %1714 = vmatmul.mubr.bf16.gmra.mxu0 %v914
      %v1715 = vpop.f32.mrf.mxu0
      %v1716 = vadd.f32 %v1247, %v1715
      %v1717 = vpop.f32.mrf.mxu0
      %v1718 = vpop.f32.mrf.mxu0
      %v1719 = vadd.f32 %v1247, %v1718
      %v1720 = vpop.f32.mrf.mxu0
      %1721 = vmatprep.mubr.bf16.mxu0 %v979
      %1722 = vmatmul.mubr.bf16.gmra.mxu0 %v915
      %v1723 = vpop.f32.mrf.mxu0
      %v1724 = vadd.f32 %v1247, %v1723
      %v1725 = vpop.f32.mrf.mxu0
      %v1726 = vpop.f32.mrf.mxu0
      %v1727 = vadd.f32 %v1247, %v1726
      %v1728 = vpop.f32.mrf.mxu0
      %1729 = vmatprep.mubr.bf16.mxu0 %v980
      %1730 = vmatmul.mubr.bf16.gmra.mxu0 %v916
      %v1731 = vpop.f32.mrf.mxu0
      %v1732 = vadd.f32 %v1247, %v1731
      %v1733 = vpop.f32.mrf.mxu0
      %v1734 = vpop.f32.mrf.mxu0
      %v1735 = vadd.f32 %v1247, %v1734
      %v1736 = vpop.f32.mrf.mxu0
      %1737 = vmatprep.mubr.bf16.mxu0 %v981
      %1738 = vmatmul.mubr.bf16.gmra.mxu0 %v917
      %v1739 = vpop.f32.mrf.mxu0
      %v1740 = vadd.f32 %v1247, %v1739
      %v1741 = vpop.f32.mrf.mxu0
      %v1742 = vpop.f32.mrf.mxu0
      %v1743 = vadd.f32 %v1247, %v1742
      %v1744 = vpop.f32.mrf.mxu0
      %1745 = vmatprep.mubr.bf16.mxu0 %v982
      %1746 = vmatmul.mubr.bf16.gmra.mxu0 %v918
      %v1747 = vpop.f32.mrf.mxu0
      %v1748 = vadd.f32 %v1247, %v1747
      %v1749 = vpop.f32.mrf.mxu0
      %v1750 = vpop.f32.mrf.mxu0
      %v1751 = vadd.f32 %v1247, %v1750
      %v1752 = vpop.f32.mrf.mxu0
      %1753 = vmatprep.mubr.bf16.mxu0 %v983
      %1754 = vmatmul.mubr.bf16.gmra.mxu0 %v919
      %v1755 = vpop.f32.mrf.mxu0
      %v1756 = vadd.f32 %v1247, %v1755
      %v1757 = vpop.f32.mrf.mxu0
      %v1758 = vpop.f32.mrf.mxu0
      %v1759 = vadd.f32 %v1247, %v1758
      %v1760 = vpop.f32.mrf.mxu0
      %1761 = vmatprep.mubr.bf16.mxu0 %v984
      %1762 = vmatmul.mubr.bf16.gmra.mxu0 %v920
      %v1763 = vpop.f32.mrf.mxu0
      %v1764 = vadd.f32 %v1247, %v1763
      %v1765 = vpop.f32.mrf.mxu0
      %v1766 = vpop.f32.mrf.mxu0
      %v1767 = vadd.f32 %v1247, %v1766
      %v1768 = vpop.f32.mrf.mxu0
      %1769 = vmatprep.mubr.bf16.mxu0 %v985
      %1770 = vmatmul.mubr.bf16.gmra.mxu0 %v921
      %v1771 = vpop.f32.mrf.mxu0
      %v1772 = vadd.f32 %v1247, %v1771
      %v1773 = vpop.f32.mrf.mxu0
      %v1774 = vpop.f32.mrf.mxu0
      %v1775 = vadd.f32 %v1247, %v1774
      %v1776 = vpop.f32.mrf.mxu0
      %1777 = vmatprep.mubr.bf16.mxu0 %v986
      %1778 = vmatmul.mubr.bf16.gmra.mxu0 %v922
      %v1779 = vpop.f32.mrf.mxu0
      %v1780 = vadd.f32 %v1247, %v1779
      %v1781 = vpop.f32.mrf.mxu0
      %v1782 = vpop.f32.mrf.mxu0
      %v1783 = vadd.f32 %v1247, %v1782
      %v1784 = vpop.f32.mrf.mxu0
      %1785 = vmatprep.mubr.bf16.mxu0 %v987
      %1786 = vmatmul.mubr.bf16.gmra.mxu0 %v923
      %v1787 = vpop.f32.mrf.mxu0
      %v1788 = vadd.f32 %v1247, %v1787
      %v1789 = vpop.f32.mrf.mxu0
      %v1790 = vpop.f32.mrf.mxu0
      %v1791 = vadd.f32 %v1247, %v1790
      %v1792 = vpop.f32.mrf.mxu0
      %1793 = vmatprep.mubr.bf16.mxu0 %v988
      %1794 = vmatmul.mubr.bf16.gmra.mxu0 %v924
      %v1795 = vpop.f32.mrf.mxu0
      %v1796 = vadd.f32 %v1247, %v1795
      %v1797 = vpop.f32.mrf.mxu0
      %v1798 = vpop.f32.mrf.mxu0
      %v1799 = vadd.f32 %v1247, %v1798
      %v1800 = vpop.f32.mrf.mxu0
      %1801 = vmatprep.mubr.bf16.mxu0 %v989
      %1802 = vmatmul.mubr.bf16.gmra.mxu0 %v925
      %v1803 = vpop.f32.mrf.mxu0
      %v1804 = vadd.f32 %v1247, %v1803
      %v1805 = vpop.f32.mrf.mxu0
      %v1806 = vpop.f32.mrf.mxu0
      %v1807 = vadd.f32 %v1247, %v1806
      %v1808 = vpop.f32.mrf.mxu0
      %1809 = vmatprep.mubr.bf16.mxu0 %v990
      %1810 = vmatmul.mubr.bf16.gmra.mxu0 %v926
      %v1811 = vpop.f32.mrf.mxu0
      %v1812 = vadd.f32 %v1247, %v1811
      %v1813 = vpop.f32.mrf.mxu0
      %v1814 = vpop.f32.mrf.mxu0
      %v1815 = vadd.f32 %v1247, %v1814
      %v1816 = vpop.f32.mrf.mxu0
      %1817 = vmatprep.mubr.bf16.mxu0 %v991
      %1818 = vmatmul.mubr.bf16.gmra.mxu0 %v927
      %v1819 = vpop.f32.mrf.mxu0
      %v1820 = vadd.f32 %v1247, %v1819
      %v1821 = vpop.f32.mrf.mxu0
      %v1822 = vpop.f32.mrf.mxu0
      %v1823 = vadd.f32 %v1247, %v1822
      %v1824 = vpop.f32.mrf.mxu0
      %1825 = vmatprep.mubr.bf16.mxu0 %v992
      %1826 = vmatmul.mubr.bf16.gmra.mxu0 %v928
      %v1827 = vpop.f32.mrf.mxu0
      %v1828 = vadd.f32 %v1247, %v1827
      %v1829 = vpop.f32.mrf.mxu0
      %v1830 = vpop.f32.mrf.mxu0
      %v1831 = vadd.f32 %v1247, %v1830
      %v1832 = vpop.f32.mrf.mxu0
      %1833 = vmatprep.mubr.bf16.mxu0 %v993
      %1834 = vmatmul.mubr.bf16.gmra.mxu0 %v929
      %v1835 = vpop.f32.mrf.mxu0
      %v1836 = vadd.f32 %v1247, %v1835
      %v1837 = vpop.f32.mrf.mxu0
      %v1838 = vpop.f32.mrf.mxu0
      %v1839 = vadd.f32 %v1247, %v1838
      %v1840 = vpop.f32.mrf.mxu0
      %1841 = vdwg.mxu0
      %1842 = vmatprep.subr.bf16.mxu0 0
      %1843 = vmatpush1.bf16.msra.mxu0 %v1560
      %1844 = vmatprep.subr.bf16.mxu0 0
      %1845 = vmatpush1.bf16.msra.mxu0 %v1559
      %1846 = vmatprep.subr.bf16.mxu0 0
      %1847 = vmatpush1.bf16.msra.mxu0 %v1558
      %1848 = vmatprep.subr.bf16.mxu0 0
      %1849 = vmatpush1.bf16.msra.mxu0 %v1557
      %1850 = vmatprep.subr.bf16.mxu0 0
      %1851 = vmatpush1.bf16.msra.mxu0 %v1556
      %1852 = vmatprep.subr.bf16.mxu0 0
      %1853 = vmatpush1.bf16.msra.mxu0 %v1555
      %1854 = vmatprep.subr.bf16.mxu0 0
      %1855 = vmatpush1.bf16.msra.mxu0 %v1554
      %1856 = vmatprep.subr.bf16.mxu0 0
      %1857 = vmatpush1.bf16.msra.mxu0 %v1553
      %1858 = vmatprep.subr.bf16.mxu0 0
      %1859 = vmatpush2.bf16.msra.mxu0 %v1568
      %1860 = vmatprep.subr.bf16.mxu0 0
      %1861 = vmatpush2.bf16.msra.mxu0 %v1567
      %1862 = vmatprep.subr.bf16.mxu0 0
      %1863 = vmatpush2.bf16.msra.mxu0 %v1566
      %1864 = vmatprep.subr.bf16.mxu0 0
      %1865 = vmatpush2.bf16.msra.mxu0 %v1565
      %1866 = vmatprep.subr.bf16.mxu0 0
      %1867 = vmatpush2.bf16.msra.mxu0 %v1564
      %1868 = vmatprep.subr.bf16.mxu0 0
      %1869 = vmatpush2.bf16.msra.mxu0 %v1563
      %1870 = vmatprep.subr.bf16.mxu0 0
      %1871 = vmatpush2.bf16.msra.mxu0 %v1562
      %1872 = vmatprep.subr.bf16.mxu0 0
      %1873 = vmatpush2.bf16.msra.mxu0 %v1561
      %1874 = vmatprep.mubr.bf16.mxu0 %v915
      %1875 = vmatmul.mubr.bf16.gmra.mxu0 %v1042
      %v1876 = vpop.f32.mrf.mxu0
      %v1877 = vadd.f32 %v1716, %v1876
      %v1878 = vpop.f32.mrf.mxu0
      %v1879 = vpop.f32.mrf.mxu0
      %v1880 = vadd.f32 %v1719, %v1879
      %v1881 = vpop.f32.mrf.mxu0
      %1882 = vmatprep.mubr.bf16.mxu0 %v916
      %1883 = vmatmul.mubr.bf16.gmra.mxu0 %v1043
      %v1884 = vpop.f32.mrf.mxu0
      %v1885 = vadd.f32 %v1724, %v1884
      %v1886 = vpop.f32.mrf.mxu0
      %v1887 = vpop.f32.mrf.mxu0
      %v1888 = vadd.f32 %v1727, %v1887
      %v1889 = vpop.f32.mrf.mxu0
      %1890 = vmatprep.mubr.bf16.mxu0 %v917
      %1891 = vmatmul.mubr.bf16.gmra.mxu0 %v1044
      %v1892 = vpop.f32.mrf.mxu0
      %v1893 = vadd.f32 %v1732, %v1892
      %v1894 = vpop.f32.mrf.mxu0
      %v1895 = vpop.f32.mrf.mxu0
      %v1896 = vadd.f32 %v1735, %v1895
      %v1897 = vpop.f32.mrf.mxu0
      %1898 = vmatprep.mubr.bf16.mxu0 %v918
      %1899 = vmatmul.mubr.bf16.gmra.mxu0 %v1045
      %v1900 = vpop.f32.mrf.mxu0
      %v1901 = vadd.f32 %v1740, %v1900
      %v1902 = vpop.f32.mrf.mxu0
      %v1903 = vpop.f32.mrf.mxu0
      %v1904 = vadd.f32 %v1743, %v1903
      %v1905 = vpop.f32.mrf.mxu0
      %1906 = vmatprep.mubr.bf16.mxu0 %v919
      %1907 = vmatmul.mubr.bf16.gmra.mxu0 %v1046
      %v1908 = vpop.f32.mrf.mxu0
      %v1909 = vadd.f32 %v1748, %v1908
      %v1910 = vpop.f32.mrf.mxu0
      %v1911 = vpop.f32.mrf.mxu0
      %v1912 = vadd.f32 %v1751, %v1911
      %v1913 = vpop.f32.mrf.mxu0
      %1914 = vmatprep.mubr.bf16.mxu0 %v920
      %1915 = vmatmul.mubr.bf16.gmra.mxu0 %v1047
      %v1916 = vpop.f32.mrf.mxu0
      %v1917 = vadd.f32 %v1756, %v1916
      %v1918 = vpop.f32.mrf.mxu0
      %v1919 = vpop.f32.mrf.mxu0
      %v1920 = vadd.f32 %v1759, %v1919
      %v1921 = vpop.f32.mrf.mxu0
      %1922 = vmatprep.mubr.bf16.mxu0 %v921
      %1923 = vmatmul.mubr.bf16.gmra.mxu0 %v1048
      %v1924 = vpop.f32.mrf.mxu0
      %v1925 = vadd.f32 %v1764, %v1924
      %v1926 = vpop.f32.mrf.mxu0
      %v1927 = vpop.f32.mrf.mxu0
      %v1928 = vadd.f32 %v1767, %v1927
      %v1929 = vpop.f32.mrf.mxu0
      %1930 = vmatprep.mubr.bf16.mxu0 %v922
      %1931 = vmatmul.mubr.bf16.gmra.mxu0 %v1049
      %v1932 = vpop.f32.mrf.mxu0
      %v1933 = vadd.f32 %v1772, %v1932
      %v1934 = vpop.f32.mrf.mxu0
      %v1935 = vpop.f32.mrf.mxu0
      %v1936 = vadd.f32 %v1775, %v1935
      %v1937 = vpop.f32.mrf.mxu0
      %1938 = vmatprep.mubr.bf16.mxu0 %v923
      %1939 = vmatmul.mubr.bf16.gmra.mxu0 %v1050
      %v1940 = vpop.f32.mrf.mxu0
      %v1941 = vadd.f32 %v1780, %v1940
      %v1942 = vpop.f32.mrf.mxu0
      %v1943 = vpop.f32.mrf.mxu0
      %v1944 = vadd.f32 %v1783, %v1943
      %v1945 = vpop.f32.mrf.mxu0
      %1946 = vmatprep.mubr.bf16.mxu0 %v924
      %1947 = vmatmul.mubr.bf16.gmra.mxu0 %v1051
      %v1948 = vpop.f32.mrf.mxu0
      %v1949 = vadd.f32 %v1788, %v1948
      %v1950 = vpop.f32.mrf.mxu0
      %v1951 = vpop.f32.mrf.mxu0
      %v1952 = vadd.f32 %v1791, %v1951
      %v1953 = vpop.f32.mrf.mxu0
      %1954 = vmatprep.mubr.bf16.mxu0 %v925
      %1955 = vmatmul.mubr.bf16.gmra.mxu0 %v1052
      %v1956 = vpop.f32.mrf.mxu0
      %v1957 = vadd.f32 %v1796, %v1956
      %v1958 = vpop.f32.mrf.mxu0
      %v1959 = vpop.f32.mrf.mxu0
      %v1960 = vadd.f32 %v1799, %v1959
      %v1961 = vpop.f32.mrf.mxu0
      %1962 = vmatprep.mubr.bf16.mxu0 %v926
      %1963 = vmatmul.mubr.bf16.gmra.mxu0 %v1053
      %v1964 = vpop.f32.mrf.mxu0
      %v1965 = vadd.f32 %v1804, %v1964
      %v1966 = vpop.f32.mrf.mxu0
      %v1967 = vpop.f32.mrf.mxu0
      %v1968 = vadd.f32 %v1807, %v1967
      %v1969 = vpop.f32.mrf.mxu0
      %1970 = vmatprep.mubr.bf16.mxu0 %v927
      %1971 = vmatmul.mubr.bf16.gmra.mxu0 %v1054
      %v1972 = vpop.f32.mrf.mxu0
      %v1973 = vadd.f32 %v1812, %v1972
      %v1974 = vpop.f32.mrf.mxu0
      %v1975 = vpop.f32.mrf.mxu0
      %v1976 = vadd.f32 %v1815, %v1975
      %v1977 = vpop.f32.mrf.mxu0
      %1978 = vmatprep.mubr.bf16.mxu0 %v928
      %1979 = vmatmul.mubr.bf16.gmra.mxu0 %v1055
      %v1980 = vpop.f32.mrf.mxu0
      %v1981 = vadd.f32 %v1820, %v1980
      %v1982 = vpop.f32.mrf.mxu0
      %v1983 = vpop.f32.mrf.mxu0
      %v1984 = vadd.f32 %v1823, %v1983
      %v1985 = vpop.f32.mrf.mxu0
      %1986 = vmatprep.mubr.bf16.mxu0 %v929
      %1987 = vmatmul.mubr.bf16.gmra.mxu0 %v1056
      %v1988 = vpop.f32.mrf.mxu0
      %v1989 = vadd.f32 %v1828, %v1988
      %v1990 = vpop.f32.mrf.mxu0
      %v1991 = vpop.f32.mrf.mxu0
      %v1992 = vadd.f32 %v1831, %v1991
      %v1993 = vpop.f32.mrf.mxu0
      %1994 = vmatprep.mubr.bf16.mxu0 %v1076
      %1995 = vmatmul.mubr.bf16.gmra.mxu0 %v1057
      %v1996 = vpop.f32.mrf.mxu0
      %v1997 = vadd.f32 %v1836, %v1996
      %v1998 = vpop.f32.mrf.mxu0
      %v1999 = vpop.f32.mrf.mxu0
      %v2000 = vadd.f32 %v1839, %v1999
      %v2001 = vpop.f32.mrf.mxu0
      %2002 = vdwg.mxu0
      %2003 = vmatprep.subr.bf16.mxu0 0
      %2004 = vmatpush1.bf16.msra.mxu0 %v1576
      %2005 = vmatprep.subr.bf16.mxu0 0
      %2006 = vmatpush1.bf16.msra.mxu0 %v1575
      %2007 = vmatprep.subr.bf16.mxu0 0
      %2008 = vmatpush1.bf16.msra.mxu0 %v1574
      %2009 = vmatprep.subr.bf16.mxu0 0
      %2010 = vmatpush1.bf16.msra.mxu0 %v1573
      %2011 = vmatprep.subr.bf16.mxu0 0
      %2012 = vmatpush1.bf16.msra.mxu0 %v1572
      %2013 = vmatprep.subr.bf16.mxu0 0
      %2014 = vmatpush1.bf16.msra.mxu0 %v1571
      %2015 = vmatprep.subr.bf16.mxu0 0
      %2016 = vmatpush1.bf16.msra.mxu0 %v1570
      %2017 = vmatprep.subr.bf16.mxu0 0
      %2018 = vmatpush1.bf16.msra.mxu0 %v1569
      %2019 = vmatprep.subr.bf16.mxu0 0
      %2020 = vmatpush2.bf16.msra.mxu0 %v1584
      %2021 = vmatprep.subr.bf16.mxu0 0
      %2022 = vmatpush2.bf16.msra.mxu0 %v1583
      %2023 = vmatprep.subr.bf16.mxu0 0
      %2024 = vmatpush2.bf16.msra.mxu0 %v1582
      %2025 = vmatprep.subr.bf16.mxu0 0
      %2026 = vmatpush2.bf16.msra.mxu0 %v1581
      %2027 = vmatprep.subr.bf16.mxu0 0
      %2028 = vmatpush2.bf16.msra.mxu0 %v1580
      %2029 = vmatprep.subr.bf16.mxu0 0
      %2030 = vmatpush2.bf16.msra.mxu0 %v1579
      %2031 = vmatprep.subr.bf16.mxu0 0
      %2032 = vmatpush2.bf16.msra.mxu0 %v1578
      %2033 = vmatprep.subr.bf16.mxu0 0
      %2034 = vmatpush2.bf16.msra.mxu0 %v1577
      %2035 = vmatprep.mubr.bf16.mxu0 %v1043
      %2036 = vmatmul.mubr.bf16.gmra.mxu0 %v979
      %v2037 = vpop.f32.mrf.mxu0
      %v2038 = vadd.f32 %v1877, %v2037
      %v2039 = vpop.f32.mrf.mxu0
      %v2040 = vpop.f32.mrf.mxu0
      %v2041 = vadd.f32 %v1880, %v2040
      %v2042 = vpop.f32.mrf.mxu0
      %2043 = vmatprep.mubr.bf16.mxu0 %v1044
      %2044 = vmatmul.mubr.bf16.gmra.mxu0 %v980
      %v2045 = vpop.f32.mrf.mxu0
      %v2046 = vadd.f32 %v1885, %v2045
      %v2047 = vpop.f32.mrf.mxu0
      %v2048 = vpop.f32.mrf.mxu0
      %v2049 = vadd.f32 %v1888, %v2048
      %v2050 = vpop.f32.mrf.mxu0
      %2051 = vmatprep.mubr.bf16.mxu0 %v1045
      %2052 = vmatmul.mubr.bf16.gmra.mxu0 %v981
      %v2053 = vpop.f32.mrf.mxu0
      %v2054 = vadd.f32 %v1893, %v2053
      %v2055 = vpop.f32.mrf.mxu0
      %v2056 = vpop.f32.mrf.mxu0
      %v2057 = vadd.f32 %v1896, %v2056
      %v2058 = vpop.f32.mrf.mxu0
      %2059 = vmatprep.mubr.bf16.mxu0 %v1046
      %2060 = vmatmul.mubr.bf16.gmra.mxu0 %v982
      %v2061 = vpop.f32.mrf.mxu0
      %v2062 = vadd.f32 %v1901, %v2061
      %v2063 = vpop.f32.mrf.mxu0
      %v2064 = vpop.f32.mrf.mxu0
      %v2065 = vadd.f32 %v1904, %v2064
      %v2066 = vpop.f32.mrf.mxu0
      %2067 = vmatprep.mubr.bf16.mxu0 %v1047
      %2068 = vmatmul.mubr.bf16.gmra.mxu0 %v983
      %v2069 = vpop.f32.mrf.mxu0
      %v2070 = vadd.f32 %v1909, %v2069
      %v2071 = vpop.f32.mrf.mxu0
      %v2072 = vpop.f32.mrf.mxu0
      %v2073 = vadd.f32 %v1912, %v2072
      %v2074 = vpop.f32.mrf.mxu0
      %2075 = vmatprep.mubr.bf16.mxu0 %v1048
      %2076 = vmatmul.mubr.bf16.gmra.mxu0 %v984
      %v2077 = vpop.f32.mrf.mxu0
      %v2078 = vadd.f32 %v1917, %v2077
      %v2079 = vpop.f32.mrf.mxu0
      %v2080 = vpop.f32.mrf.mxu0
      %v2081 = vadd.f32 %v1920, %v2080
      %v2082 = vpop.f32.mrf.mxu0
      %2083 = vmatprep.mubr.bf16.mxu0 %v1049
      %2084 = vmatmul.mubr.bf16.gmra.mxu0 %v985
      %v2085 = vpop.f32.mrf.mxu0
      %v2086 = vadd.f32 %v1925, %v2085
      %v2087 = vpop.f32.mrf.mxu0
      %v2088 = vpop.f32.mrf.mxu0
      %v2089 = vadd.f32 %v1928, %v2088
      %v2090 = vpop.f32.mrf.mxu0
      %2091 = vmatprep.mubr.bf16.mxu0 %v1050
      %2092 = vmatmul.mubr.bf16.gmra.mxu0 %v986
      %v2093 = vpop.f32.mrf.mxu0
      %v2094 = vadd.f32 %v1933, %v2093
      %v2095 = vpop.f32.mrf.mxu0
      %v2096 = vpop.f32.mrf.mxu0
      %v2097 = vadd.f32 %v1936, %v2096
      %v2098 = vpop.f32.mrf.mxu0
      %2099 = vmatprep.mubr.bf16.mxu0 %v1051
      %2100 = vmatmul.mubr.bf16.gmra.mxu0 %v987
      %v2101 = vpop.f32.mrf.mxu0
      %v2102 = vadd.f32 %v1941, %v2101
      %v2103 = vpop.f32.mrf.mxu0
      %v2104 = vpop.f32.mrf.mxu0
      %v2105 = vadd.f32 %v1944, %v2104
      %v2106 = vpop.f32.mrf.mxu0
      %2107 = vmatprep.mubr.bf16.mxu0 %v1052
      %2108 = vmatmul.mubr.bf16.gmra.mxu0 %v988
      %v2109 = vpop.f32.mrf.mxu0
      %v2110 = vadd.f32 %v1949, %v2109
      %v2111 = vpop.f32.mrf.mxu0
      %v2112 = vpop.f32.mrf.mxu0
      %v2113 = vadd.f32 %v1952, %v2112
      %v2114 = vpop.f32.mrf.mxu0
      %2115 = vmatprep.mubr.bf16.mxu0 %v1053
      %2116 = vmatmul.mubr.bf16.gmra.mxu0 %v989
      %v2117 = vpop.f32.mrf.mxu0
      %v2118 = vadd.f32 %v1957, %v2117
      %v2119 = vpop.f32.mrf.mxu0
      %v2120 = vpop.f32.mrf.mxu0
      %v2121 = vadd.f32 %v1960, %v2120
      %v2122 = vpop.f32.mrf.mxu0
      %2123 = vmatprep.mubr.bf16.mxu0 %v1054
      %2124 = vmatmul.mubr.bf16.gmra.mxu0 %v990
      %v2125 = vpop.f32.mrf.mxu0
      %v2126 = vadd.f32 %v1965, %v2125
      %v2127 = vpop.f32.mrf.mxu0
      %v2128 = vpop.f32.mrf.mxu0
      %v2129 = vadd.f32 %v1968, %v2128
      %v2130 = vpop.f32.mrf.mxu0
      %2131 = vmatprep.mubr.bf16.mxu0 %v1055
      %2132 = vmatmul.mubr.bf16.gmra.mxu0 %v991
      %v2133 = vpop.f32.mrf.mxu0
      %v2134 = vadd.f32 %v1973, %v2133
      %v2135 = vpop.f32.mrf.mxu0
      %v2136 = vpop.f32.mrf.mxu0
      %v2137 = vadd.f32 %v1976, %v2136
      %v2138 = vpop.f32.mrf.mxu0
      %2139 = vmatprep.mubr.bf16.mxu0 %v1056
      %2140 = vmatmul.mubr.bf16.gmra.mxu0 %v992
      %v2141 = vpop.f32.mrf.mxu0
      %v2142 = vadd.f32 %v1981, %v2141
      %v2143 = vpop.f32.mrf.mxu0
      %v2144 = vpop.f32.mrf.mxu0
      %v2145 = vadd.f32 %v1984, %v2144
      %v2146 = vpop.f32.mrf.mxu0
      %2147 = vmatprep.mubr.bf16.mxu0 %v1057
      %2148 = vmatmul.mubr.bf16.gmra.mxu0 %v993
      %v2149 = vpop.f32.mrf.mxu0
      %v2150 = vadd.f32 %v1989, %v2149
      %v2151 = vpop.f32.mrf.mxu0
      %v2152 = vpop.f32.mrf.mxu0
      %v2153 = vadd.f32 %v1992, %v2152
      %v2154 = vpop.f32.mrf.mxu0
      %2155 = vmatprep.mubr.bf16.mxu0 %v1084
      %2156 = vmatmul.mubr.bf16.gmra.mxu0 %v1080
      %v2157 = vpop.f32.mrf.mxu0
      %v2158 = vadd.f32 %v1997, %v2157
      %v2159 = vpop.f32.mrf.mxu0
      %v2160 = vpop.f32.mrf.mxu0
      %v2161 = vadd.f32 %v2000, %v2160
      %v2162 = vpop.f32.mrf.mxu0
      %2163 = vdwg.mxu0
      %2164 = vmatprep.subr.bf16.mxu0 0
      %2165 = vmatpush1.bf16.msra.mxu0 %v1592
      %2166 = vmatprep.subr.bf16.mxu0 0
      %2167 = vmatpush1.bf16.msra.mxu0 %v1591
      %2168 = vmatprep.subr.bf16.mxu0 0
      %2169 = vmatpush1.bf16.msra.mxu0 %v1590
      %2170 = vmatprep.subr.bf16.mxu0 0
      %2171 = vmatpush1.bf16.msra.mxu0 %v1589
      %2172 = vmatprep.subr.bf16.mxu0 0
      %2173 = vmatpush1.bf16.msra.mxu0 %v1588
      %2174 = vmatprep.subr.bf16.mxu0 0
      %2175 = vmatpush1.bf16.msra.mxu0 %v1587
      %2176 = vmatprep.subr.bf16.mxu0 0
      %2177 = vmatpush1.bf16.msra.mxu0 %v1586
      %2178 = vmatprep.subr.bf16.mxu0 0
      %2179 = vmatpush1.bf16.msra.mxu0 %v1585
      %2180 = vmatprep.subr.bf16.mxu0 0
      %2181 = vmatpush2.bf16.msra.mxu0 %v1600
      %2182 = vmatprep.subr.bf16.mxu0 0
      %2183 = vmatpush2.bf16.msra.mxu0 %v1599
      %2184 = vmatprep.subr.bf16.mxu0 0
      %2185 = vmatpush2.bf16.msra.mxu0 %v1598
      %2186 = vmatprep.subr.bf16.mxu0 0
      %2187 = vmatpush2.bf16.msra.mxu0 %v1597
      %2188 = vmatprep.subr.bf16.mxu0 0
      %2189 = vmatpush2.bf16.msra.mxu0 %v1596
      %2190 = vmatprep.subr.bf16.mxu0 0
      %2191 = vmatpush2.bf16.msra.mxu0 %v1595
      %2192 = vmatprep.subr.bf16.mxu0 0
      %2193 = vmatpush2.bf16.msra.mxu0 %v1594
      %2194 = vmatprep.subr.bf16.mxu0 0
      %2195 = vmatpush2.bf16.msra.mxu0 %v1593
      %2196 = vmatprep.mubr.bf16.mxu0 %v980
      %2197 = vmatmul.mubr.bf16.gmra.mxu0 %v916
      %v2198 = vpop.f32.mrf.mxu0
      %v2199 = vadd.f32 %v2038, %v2198
      %v2200 = vpop.f32.mrf.mxu0
      %v2201 = vpop.f32.mrf.mxu0
      %v2202 = vadd.f32 %v2041, %v2201
      %v2203 = vpop.f32.mrf.mxu0
      %2204 = vmatprep.mubr.bf16.mxu0 %v981
      %2205 = vmatmul.mubr.bf16.gmra.mxu0 %v917
      %v2206 = vpop.f32.mrf.mxu0
      %v2207 = vadd.f32 %v2046, %v2206
      %v2208 = vpop.f32.mrf.mxu0
      %v2209 = vpop.f32.mrf.mxu0
      %v2210 = vadd.f32 %v2049, %v2209
      %v2211 = vpop.f32.mrf.mxu0
      %2212 = vmatprep.mubr.bf16.mxu0 %v982
      %2213 = vmatmul.mubr.bf16.gmra.mxu0 %v918
      %v2214 = vpop.f32.mrf.mxu0
      %v2215 = vadd.f32 %v2054, %v2214
      %v2216 = vpop.f32.mrf.mxu0
      %v2217 = vpop.f32.mrf.mxu0
      %v2218 = vadd.f32 %v2057, %v2217
      %v2219 = vpop.f32.mrf.mxu0
      %2220 = vmatprep.mubr.bf16.mxu0 %v983
      %2221 = vmatmul.mubr.bf16.gmra.mxu0 %v919
      %v2222 = vpop.f32.mrf.mxu0
      %v2223 = vadd.f32 %v2062, %v2222
      %v2224 = vpop.f32.mrf.mxu0
      %v2225 = vpop.f32.mrf.mxu0
      %v2226 = vadd.f32 %v2065, %v2225
      %v2227 = vpop.f32.mrf.mxu0
      %2228 = vmatprep.mubr.bf16.mxu0 %v984
      %2229 = vmatmul.mubr.bf16.gmra.mxu0 %v920
      %v2230 = vpop.f32.mrf.mxu0
      %v2231 = vadd.f32 %v2070, %v2230
      %v2232 = vpop.f32.mrf.mxu0
      %v2233 = vpop.f32.mrf.mxu0
      %v2234 = vadd.f32 %v2073, %v2233
      %v2235 = vpop.f32.mrf.mxu0
      %2236 = vmatprep.mubr.bf16.mxu0 %v985
      %2237 = vmatmul.mubr.bf16.gmra.mxu0 %v921
      %v2238 = vpop.f32.mrf.mxu0
      %v2239 = vadd.f32 %v2078, %v2238
      %v2240 = vpop.f32.mrf.mxu0
      %v2241 = vpop.f32.mrf.mxu0
      %v2242 = vadd.f32 %v2081, %v2241
      %v2243 = vpop.f32.mrf.mxu0
      %2244 = vmatprep.mubr.bf16.mxu0 %v986
      %2245 = vmatmul.mubr.bf16.gmra.mxu0 %v922
      %v2246 = vpop.f32.mrf.mxu0
      %v2247 = vadd.f32 %v2086, %v2246
      %v2248 = vpop.f32.mrf.mxu0
      %v2249 = vpop.f32.mrf.mxu0
      %v2250 = vadd.f32 %v2089, %v2249
      %v2251 = vpop.f32.mrf.mxu0
      %2252 = vmatprep.mubr.bf16.mxu0 %v987
      %2253 = vmatmul.mubr.bf16.gmra.mxu0 %v923
      %v2254 = vpop.f32.mrf.mxu0
      %v2255 = vadd.f32 %v2094, %v2254
      %v2256 = vpop.f32.mrf.mxu0
      %v2257 = vpop.f32.mrf.mxu0
      %v2258 = vadd.f32 %v2097, %v2257
      %v2259 = vpop.f32.mrf.mxu0
      %2260 = vmatprep.mubr.bf16.mxu0 %v988
      %2261 = vmatmul.mubr.bf16.gmra.mxu0 %v924
      %v2262 = vpop.f32.mrf.mxu0
      %v2263 = vadd.f32 %v2102, %v2262
      %v2264 = vpop.f32.mrf.mxu0
      %v2265 = vpop.f32.mrf.mxu0
      %v2266 = vadd.f32 %v2105, %v2265
      %v2267 = vpop.f32.mrf.mxu0
      %2268 = vmatprep.mubr.bf16.mxu0 %v989
      %2269 = vmatmul.mubr.bf16.gmra.mxu0 %v925
      %v2270 = vpop.f32.mrf.mxu0
      %v2271 = vadd.f32 %v2110, %v2270
      %v2272 = vpop.f32.mrf.mxu0
      %v2273 = vpop.f32.mrf.mxu0
      %v2274 = vadd.f32 %v2113, %v2273
      %v2275 = vpop.f32.mrf.mxu0
      %2276 = vmatprep.mubr.bf16.mxu0 %v990
      %2277 = vmatmul.mubr.bf16.gmra.mxu0 %v926
      %v2278 = vpop.f32.mrf.mxu0
      %v2279 = vadd.f32 %v2118, %v2278
      %v2280 = vpop.f32.mrf.mxu0
      %v2281 = vpop.f32.mrf.mxu0
      %v2282 = vadd.f32 %v2121, %v2281
      %v2283 = vpop.f32.mrf.mxu0
      %2284 = vmatprep.mubr.bf16.mxu0 %v991
      %2285 = vmatmul.mubr.bf16.gmra.mxu0 %v927
      %v2286 = vpop.f32.mrf.mxu0
      %v2287 = vadd.f32 %v2126, %v2286
      %v2288 = vpop.f32.mrf.mxu0
      %v2289 = vpop.f32.mrf.mxu0
      %v2290 = vadd.f32 %v2129, %v2289
      %v2291 = vpop.f32.mrf.mxu0
      %2292 = vmatprep.mubr.bf16.mxu0 %v992
      %2293 = vmatmul.mubr.bf16.gmra.mxu0 %v928
      %v2294 = vpop.f32.mrf.mxu0
      %v2295 = vadd.f32 %v2134, %v2294
      %v2296 = vpop.f32.mrf.mxu0
      %v2297 = vpop.f32.mrf.mxu0
      %v2298 = vadd.f32 %v2137, %v2297
      %v2299 = vpop.f32.mrf.mxu0
      %2300 = vmatprep.mubr.bf16.mxu0 %v993
      %2301 = vmatmul.mubr.bf16.gmra.mxu0 %v929
      %v2302 = vpop.f32.mrf.mxu0
      %v2303 = vadd.f32 %v2142, %v2302
      %v2304 = vpop.f32.mrf.mxu0
      %v2305 = vpop.f32.mrf.mxu0
      %v2306 = vadd.f32 %v2145, %v2305
      %v2307 = vpop.f32.mrf.mxu0
      %2308 = vmatprep.mubr.bf16.mxu0 %v1080
      %2309 = vmatmul.mubr.bf16.gmra.mxu0 %v1076
      %v2310 = vpop.f32.mrf.mxu0
      %v2311 = vadd.f32 %v2150, %v2310
      %v2312 = vpop.f32.mrf.mxu0
      %v2313 = vpop.f32.mrf.mxu0
      %v2314 = vadd.f32 %v2153, %v2313
      %v2315 = vpop.f32.mrf.mxu0
      %2316 = vmatprep.mubr.bf16.mxu0 %v1092
      %2317 = vmatmul.mubr.bf16.gmra.mxu0 %v1088
      %v2318 = vpop.f32.mrf.mxu0
      %v2319 = vadd.f32 %v2158, %v2318
      %v2320 = vpop.f32.mrf.mxu0
      %v2321 = vpop.f32.mrf.mxu0
      %v2322 = vadd.f32 %v2161, %v2321
      %v2323 = vpop.f32.mrf.mxu0
      %2324 = vdwg.mxu0
      %2325 = vmatprep.subr.bf16.mxu0 0
      %2326 = vmatpush1.bf16.msra.mxu0 %v1608
      %2327 = vmatprep.subr.bf16.mxu0 0
      %2328 = vmatpush1.bf16.msra.mxu0 %v1607
      %2329 = vmatprep.subr.bf16.mxu0 0
      %2330 = vmatpush1.bf16.msra.mxu0 %v1606
      %2331 = vmatprep.subr.bf16.mxu0 0
      %2332 = vmatpush1.bf16.msra.mxu0 %v1605
      %2333 = vmatprep.subr.bf16.mxu0 0
      %2334 = vmatpush1.bf16.msra.mxu0 %v1604
      %2335 = vmatprep.subr.bf16.mxu0 0
      %2336 = vmatpush1.bf16.msra.mxu0 %v1603
      %2337 = vmatprep.subr.bf16.mxu0 0
      %2338 = vmatpush1.bf16.msra.mxu0 %v1602
      %2339 = vmatprep.subr.bf16.mxu0 0
      %2340 = vmatpush1.bf16.msra.mxu0 %v1601
      %2341 = vmatprep.subr.bf16.mxu0 0
      %2342 = vmatpush2.bf16.msra.mxu0 0
      %2343 = vmatprep.subr.bf16.mxu0 0
      %2344 = vmatpush2.bf16.msra.mxu0 0
      %2345 = vmatprep.subr.bf16.mxu0 0
      %2346 = vmatpush2.bf16.msra.mxu0 0
      %2347 = vmatprep.subr.bf16.mxu0 0
      %2348 = vmatpush2.bf16.msra.mxu0 0
      %2349 = vmatprep.subr.bf16.mxu0 0
      %2350 = vmatpush2.bf16.msra.mxu0 0
      %2351 = vmatprep.subr.bf16.mxu0 0
      %2352 = vmatpush2.bf16.msra.mxu0 0
      %2353 = vmatprep.subr.bf16.mxu0 0
      %2354 = vmatpush2.bf16.msra.mxu0 0
      %2355 = vmatprep.subr.bf16.mxu0 0
      %2356 = vmatpush2.bf16.msra.mxu0 0
      %2357 = vmatprep.mubr.bf16.mxu0 0
      %2358 = vmatmul.mubr.bf16.gmra.mxu0 %v1044
      %v2359 = vpop.f32.mrf.mxu0
      %v2360 = vadd.f32 %v2199, %v2359
      %v2361 = vpop.f32.mrf.mxu0
      %v2362 = vpop.f32.mrf.mxu0
      %v2363 = vadd.f32 %v2202, %v2362
      %v2364 = vpop.f32.mrf.mxu0
      %2365 = vmatprep.mubr.bf16.mxu0 0
      %2366 = vmatmul.mubr.bf16.gmra.mxu0 %v1045
      %v2367 = vpop.f32.mrf.mxu0
      %v2368 = vadd.f32 %v2207, %v2367
      %v2369 = vpop.f32.mrf.mxu0
      %v2370 = vpop.f32.mrf.mxu0
      %v2371 = vadd.f32 %v2210, %v2370
      %v2372 = vpop.f32.mrf.mxu0
      %2373 = vmatprep.mubr.bf16.mxu0 0
      %2374 = vmatmul.mubr.bf16.gmra.mxu0 %v1046
      %v2375 = vpop.f32.mrf.mxu0
      %v2376 = vadd.f32 %v2215, %v2375
      %v2377 = vpop.f32.mrf.mxu0
      %v2378 = vpop.f32.mrf.mxu0
      %v2379 = vadd.f32 %v2218, %v2378
      %v2380 = vpop.f32.mrf.mxu0
      %2381 = vmatprep.mubr.bf16.mxu0 0
      %2382 = vmatmul.mubr.bf16.gmra.mxu0 %v1047
      %v2383 = vpop.f32.mrf.mxu0
      %v2384 = vadd.f32 %v2223, %v2383
      %v2385 = vpop.f32.mrf.mxu0
      %v2386 = vpop.f32.mrf.mxu0
      %v2387 = vadd.f32 %v2226, %v2386
      %v2388 = vpop.f32.mrf.mxu0
      %2389 = vmatprep.mubr.bf16.mxu0 0
      %2390 = vmatmul.mubr.bf16.gmra.mxu0 %v1048
      %v2391 = vpop.f32.mrf.mxu0
      %v2392 = vadd.f32 %v2231, %v2391
      %v2393 = vpop.f32.mrf.mxu0
      %v2394 = vpop.f32.mrf.mxu0
      %v2395 = vadd.f32 %v2234, %v2394
      %v2396 = vpop.f32.mrf.mxu0
      %2397 = vmatprep.mubr.bf16.mxu0 0
      %2398 = vmatmul.mubr.bf16.gmra.mxu0 %v1049
      %v2399 = vpop.f32.mrf.mxu0
      %v2400 = vadd.f32 %v2239, %v2399
      %v2401 = vpop.f32.mrf.mxu0
      %v2402 = vpop.f32.mrf.mxu0
      %v2403 = vadd.f32 %v2242, %v2402
      %v2404 = vpop.f32.mrf.mxu0
      %2405 = vmatprep.mubr.bf16.mxu0 0
      %2406 = vmatmul.mubr.bf16.gmra.mxu0 %v1050
      %v2407 = vpop.f32.mrf.mxu0
      %v2408 = vadd.f32 %v2247, %v2407
      %v2409 = vpop.f32.mrf.mxu0
      %v2410 = vpop.f32.mrf.mxu0
      %v2411 = vadd.f32 %v2250, %v2410
      %v2412 = vpop.f32.mrf.mxu0
      %2413 = vmatprep.mubr.bf16.mxu0 0
      %2414 = vmatmul.mubr.bf16.gmra.mxu0 %v1051
      %v2415 = vpop.f32.mrf.mxu0
      %v2416 = vadd.f32 %v2255, %v2415
      %v2417 = vpop.f32.mrf.mxu0
      %v2418 = vpop.f32.mrf.mxu0
      %v2419 = vadd.f32 %v2258, %v2418
      %v2420 = vpop.f32.mrf.mxu0
      %2421 = vmatprep.mubr.bf16.mxu0 0
      %2422 = vmatmul.mubr.bf16.gmra.mxu0 %v1052
      %v2423 = vpop.f32.mrf.mxu0
      %v2424 = vadd.f32 %v2263, %v2423
      %v2425 = vpop.f32.mrf.mxu0
      %v2426 = vpop.f32.mrf.mxu0
      %v2427 = vadd.f32 %v2266, %v2426
      %v2428 = vpop.f32.mrf.mxu0
      %2429 = vmatprep.mubr.bf16.mxu0 0
      %2430 = vmatmul.mubr.bf16.gmra.mxu0 %v1053
      %v2431 = vpop.f32.mrf.mxu0
      %v2432 = vadd.f32 %v2271, %v2431
      %v2433 = vpop.f32.mrf.mxu0
      %v2434 = vpop.f32.mrf.mxu0
      %v2435 = vadd.f32 %v2274, %v2434
      %v2436 = vpop.f32.mrf.mxu0
      %2437 = vmatprep.mubr.bf16.mxu0 0
      %2438 = vmatmul.mubr.bf16.gmra.mxu0 %v1054
      %v2439 = vpop.f32.mrf.mxu0
      %v2440 = vadd.f32 %v2279, %v2439
      %v2441 = vpop.f32.mrf.mxu0
      %v2442 = vpop.f32.mrf.mxu0
      %v2443 = vadd.f32 %v2282, %v2442
      %v2444 = vpop.f32.mrf.mxu0
      %2445 = vmatprep.mubr.bf16.mxu0 0
      %2446 = vmatmul.mubr.bf16.gmra.mxu0 %v1055
      %v2447 = vpop.f32.mrf.mxu0
      %v2448 = vadd.f32 %v2287, %v2447
      %v2449 = vpop.f32.mrf.mxu0
      %v2450 = vpop.f32.mrf.mxu0
      %v2451 = vadd.f32 %v2290, %v2450
      %v2452 = vpop.f32.mrf.mxu0
      %2453 = vmatprep.mubr.bf16.mxu0 0
      %2454 = vmatmul.mubr.bf16.gmra.mxu0 %v1056
      %v2455 = vpop.f32.mrf.mxu0
      %v2456 = vadd.f32 %v2295, %v2455
      %v2457 = vpop.f32.mrf.mxu0
      %v2458 = vpop.f32.mrf.mxu0
      %v2459 = vadd.f32 %v2298, %v2458
      %v2460 = vpop.f32.mrf.mxu0
      %2461 = vmatprep.mubr.bf16.mxu0 0
      %2462 = vmatmul.mubr.bf16.gmra.mxu0 %v1057
      %v2463 = vpop.f32.mrf.mxu0
      %v2464 = vadd.f32 %v2303, %v2463
      %v2465 = vpop.f32.mrf.mxu0
      %v2466 = vpop.f32.mrf.mxu0
      %v2467 = vadd.f32 %v2306, %v2466
      %v2468 = vpop.f32.mrf.mxu0
      %2469 = vmatprep.mubr.bf16.mxu0 0
      %2470 = vmatmul.mubr.bf16.gmra.mxu0 %v1084
      %v2471 = vpop.f32.mrf.mxu0
      %v2472 = vadd.f32 %v2311, %v2471
      %v2473 = vpop.f32.mrf.mxu0
      %v2474 = vpop.f32.mrf.mxu0
      %v2475 = vadd.f32 %v2314, %v2474
      %v2476 = vpop.f32.mrf.mxu0
      %2477 = vmatprep.mubr.bf16.mxu0 0
      %2478 = vmatmul.mubr.bf16.gmra.mxu0 %v1096
      %v2479 = vpop.f32.mrf.mxu0
      %v2480 = vadd.f32 %v2319, %v2479
      %v2481 = vpop.f32.mrf.mxu0
      %v2482 = vpop.f32.mrf.mxu0
      %v2483 = vadd.f32 %v2322, %v2482
      %v2484 = vpop.f32.mrf.mxu0
      %2485 = vdwg.mxu0
      %v2486 = vmax.f32 %v2360, 0.0
      %v2487 = vmax.f32 %v2363, 0.0
      %v2488 = vmax.f32 %v2368, 0.0
      %v2489 = vmax.f32 %v2371, 0.0
      %v2490 = vmax.f32 %v2376, 0.0
      %v2491 = vmax.f32 %v2379, 0.0
      %v2492 = vmax.f32 %v2384, 0.0
      %v2493 = vmax.f32 %v2387, 0.0
      %v2494 = vmax.f32 %v2392, 0.0
      %v2495 = vmax.f32 %v2395, 0.0
      %v2496 = vmax.f32 %v2400, 0.0
      %v2497 = vmax.f32 %v2403, 0.0
      %v2498 = vmax.f32 %v2408, 0.0
      %v2499 = vmax.f32 %v2411, 0.0
      %v2500 = vmax.f32 %v2416, 0.0
      %v2501 = vmax.f32 %v2419, 0.0
      %v2502 = vmax.f32 %v2424, 0.0
      %v2503 = vmax.f32 %v2427, 0.0
      %v2504 = vmax.f32 %v2432, 0.0
      %v2505 = vmax.f32 %v2435, 0.0
      %v2506 = vmax.f32 %v2440, 0.0
      %v2507 = vmax.f32 %v2443, 0.0
      %v2508 = vmax.f32 %v2448, 0.0
      %v2509 = vmax.f32 %v2451, 0.0
      %v2510 = vmax.f32 %v2456, 0.0
      %v2511 = vmax.f32 %v2459, 0.0
      %v2512 = vmax.f32 %v2464, 0.0
      %v2513 = vmax.f32 %v2467, 0.0
      %v2514 = vmax.f32 %v2472, 0.0
      %v2515 = vmax.f32 %v2475, 0.0
      %v2516 = vmax.f32 %v2480, 0.0
      %v2517 = vmax.f32 %v2483, 0.0
      %2518 = vst [vmem:[%s204] sm:$0xff] %v2486
      %2519 = vst [vmem:[%s204 + $0x8] sm:$0xff] %v2487
      %2520 = vst [vmem:[%s204 + $0x10] sm:$0xff] %v2488
      %2521 = vst [vmem:[%s204 + $0x18] sm:$0xff] %v2489
      %2522 = vst [vmem:[%s204 + $0x20] sm:$0xff] %v2490
      %2523 = vst [vmem:[%s204 + $0x28] sm:$0xff] %v2491
      %2524 = vst [vmem:[%s204 + $0x30] sm:$0xff] %v2492
      %2525 = vst [vmem:[%s204 + $0x38] sm:$0xff] %v2493
      %2526 = vst [vmem:[%s204 + $0x40] sm:$0xff] %v2494
      %2527 = vst [vmem:[%s204 + $0x48] sm:$0xff] %v2495
      %2528 = vst [vmem:[%s204 + $0x50] sm:$0xff] %v2496
      %2529 = vst [vmem:[%s204 + $0x58] sm:$0xff] %v2497
      %2530 = vst [vmem:[%s204 + $0x60] sm:$0xff] %v2498
      %2531 = vst [vmem:[%s204 + $0x68] sm:$0xff] %v2499
      %2532 = vst [vmem:[%s204 + $0x70] sm:$0xff] %v2500
      %2533 = vst [vmem:[%s204 + $0x78] sm:$0xff] %v2501
      %2534 = vst [vmem:[%s204 + $0x80] sm:$0xff] %v2502
      %2535 = vst [vmem:[%s204 + $0x88] sm:$0xff] %v2503
      %2536 = vst [vmem:[%s204 + $0x90] sm:$0xff] %v2504
      %2537 = vst [vmem:[%s204 + $0x98] sm:$0xff] %v2505
      %2538 = vst [vmem:[%s204 + $0xa0] sm:$0xff] %v2506
      %2539 = vst [vmem:[%s204 + $0xa8] sm:$0xff] %v2507
      %2540 = vst [vmem:[%s204 + $0xb0] sm:$0xff] %v2508
      %2541 = vst [vmem:[%s204 + $0xb8] sm:$0xff] %v2509
      %2542 = vst [vmem:[%s204 + $0xc0] sm:$0xff] %v2510
      %2543 = vst [vmem:[%s204 + $0xc8] sm:$0xff] %v2511
      %2544 = vst [vmem:[%s204 + $0xd0] sm:$0xff] %v2512
      %2545 = vst [vmem:[%s204 + $0xd8] sm:$0xff] %v2513
      %2546 = vst [vmem:[%s204 + $0xe0] sm:$0xff] %v2514
      %2547 = vst [vmem:[%s204 + $0xe8] sm:$0xff] %v2515
      %2548 = vst [vmem:[%s204 + $0xf0] sm:$0xff] %v2516
      %2549 = vst [vmem:[%s204 + $0xf8] sm:$0xff] %v2517
      %v2550 = vadd.f32 %v2486, %v2487
      %v2551 = vadd.f32 %v2550, %v2488
      %v2552 = vadd.f32 %v2551, %v2489
      %v2553 = vadd.f32 %v2552, %v2490
      %v2554 = vadd.f32 %v2553, %v2491
      %v2555 = vadd.f32 %v2554, %v2492
      %v2556 = vadd.f32 %v2555, %v2493
      %v2557 = vadd.f32 %v2556, %v2494
      %v2558 = vadd.f32 %v2557, %v2495
      %v2559 = vadd.f32 %v2558, %v2496
      %v2560 = vadd.f32 %v2559, %v2497
      %v2561 = vadd.f32 %v2560, %v2498
      %v2562 = vadd.f32 %v2561, %v2499
      %v2563 = vadd.f32 %v2562, %v2500
      %v2564 = vadd.f32 %v2563, %v2501
      %v2565 = vadd.f32 %v2564, %v2502
      %v2566 = vadd.f32 %v2565, %v2503
      %v2567 = vadd.f32 %v2566, %v2504
      %v2568 = vadd.f32 %v2567, %v2505
      %v2569 = vadd.f32 %v2568, %v2506
      %v2570 = vadd.f32 %v2569, %v2507
      %v2571 = vadd.f32 %v2570, %v2508
      %v2572 = vadd.f32 %v2571, %v2509
      %v2573 = vadd.f32 %v2572, %v2510
      %v2574 = vadd.f32 %v2573, %v2511
      %v2575 = vadd.f32 %v2574, %v2512
      %v2576 = vadd.f32 %v2575, %v2513
      %v2577 = vadd.f32 %v2576, %v2514
      %v2578 = vadd.f32 %v2577, %v2515
      %v2579 = vadd.f32 %v2578, %v2516
      %v2580 = vadd.f32 %v2579, %v2517
      %v2581 = vrot.slane %v2580, 4
      %v2582 = vadd.f32 %v2580, %v2581
      %v2583 = vrot.slane %v2582, 2
      %v2584 = vadd.f32 %v2582, %v2583
      %v2585 = vrot.slane %v2584, 1
      %v2586 = vadd.f32 %v2584, %v2585
      %v2587 = vmul.f32 %v2486, %v2486
      %v2588 = vmul.f32 %v2487, %v2487
      %v2589 = vmul.f32 %v2488, %v2488
      %v2590 = vmul.f32 %v2489, %v2489
      %v2591 = vmul.f32 %v2490, %v2490
      %v2592 = vmul.f32 %v2491, %v2491
      %v2593 = vmul.f32 %v2492, %v2492
      %v2594 = vmul.f32 %v2493, %v2493
      %v2595 = vmul.f32 %v2494, %v2494
      %v2596 = vmul.f32 %v2495, %v2495
      %v2597 = vmul.f32 %v2496, %v2496
      %v2598 = vmul.f32 %v2497, %v2497
      %v2599 = vmul.f32 %v2498, %v2498
      %v2600 = vmul.f32 %v2499, %v2499
      %v2601 = vmul.f32 %v2500, %v2500
      %v2602 = vmul.f32 %v2501, %v2501
      %v2603 = vmul.f32 %v2502, %v2502
      %v2604 = vmul.f32 %v2503, %v2503
      %v2605 = vmul.f32 %v2504, %v2504
      %v2606 = vmul.f32 %v2505, %v2505
      %v2607 = vmul.f32 %v2506, %v2506
      %v2608 = vmul.f32 %v2507, %v2507
      %v2609 = vmul.f32 %v2508, %v2508
      %v2610 = vmul.f32 %v2509, %v2509
      %v2611 = vmul.f32 %v2510, %v2510
      %v2612 = vmul.f32 %v2511, %v2511
      %v2613 = vmul.f32 %v2512, %v2512
      %v2614 = vmul.f32 %v2513, %v2513
      %v2615 = vmul.f32 %v2514, %v2514
      %v2616 = vmul.f32 %v2515, %v2515
      %v2617 = vmul.f32 %v2516, %v2516
      %v2618 = vmul.f32 %v2517, %v2517
      %v2619 = vadd.f32 %v2587, %v2588
      %v2620 = vadd.f32 %v2619, %v2589
      %v2621 = vadd.f32 %v2620, %v2590
      %v2622 = vadd.f32 %v2621, %v2591
      %v2623 = vadd.f32 %v2622, %v2592
      %v2624 = vadd.f32 %v2623, %v2593
      %v2625 = vadd.f32 %v2624, %v2594
      %v2626 = vadd.f32 %v2625, %v2595
      %v2627 = vadd.f32 %v2626, %v2596
      %v2628 = vadd.f32 %v2627, %v2597
      %v2629 = vadd.f32 %v2628, %v2598
      %v2630 = vadd.f32 %v2629, %v2599
      %v2631 = vadd.f32 %v2630, %v2600
      %v2632 = vadd.f32 %v2631, %v2601
      %v2633 = vadd.f32 %v2632, %v2602
      %v2634 = vadd.f32 %v2633, %v2603
      %v2635 = vadd.f32 %v2634, %v2604
      %v2636 = vadd.f32 %v2635, %v2605
      %v2637 = vadd.f32 %v2636, %v2606
      %v2638 = vadd.f32 %v2637, %v2607
      %v2639 = vadd.f32 %v2638, %v2608
      %v2640 = vadd.f32 %v2639, %v2609
      %v2641 = vadd.f32 %v2640, %v2610
      %v2642 = vadd.f32 %v2641, %v2611
      %v2643 = vadd.f32 %v2642, %v2612
      %v2644 = vadd.f32 %v2643, %v2613
      %v2645 = vadd.f32 %v2644, %v2614
      %v2646 = vadd.f32 %v2645, %v2615
      %v2647 = vadd.f32 %v2646, %v2616
      %v2648 = vadd.f32 %v2647, %v2617
      %v2649 = vadd.f32 %v2648, %v2618
      %v2650 = vrot.slane %v2649, 4
      %v2651 = vadd.f32 %v2649, %v2650
      %v2652 = vrot.slane %v2651, 2
      %v2653 = vadd.f32 %v2651, %v2652
      %v2654 = vrot.slane %v2653, 1
      %v2655 = vadd.f32 %v2653, %v2654
      %vm2656 = vcmask 1040384
      %v2657 = vsel %vm2656, %v2586, %v2655
      %2658 = vst [vmem:[%s208] sm:$0x3] %v2657
      %p2659 = scmp.lt.s32.totalorder %s16, 1
      %s2660 = scalar_select %p2659, %s16, 1
      %s2661 = smul.addr %s2660, 32
      %s2662 = smul.addr %s2661, 8
      %s2663 = scalar_lea.vmem %s3, %s2662
      %p2664 = scmp.lt.s32.totalorder %s16, 1
      %s2665 = scalar_select %p2664, %s16, 1
      %s2666 = smul.addr %s2665, 2
      %s2667 = scalar_lea.vmem %s4, %s2666
      // Predicated region
      $region33: #{conv_forward.2} parent=31 // pred_check
        %p2668 = pneg %p102
      $region34: #{conv_forward.2} parent=31 // pred_check_branch
        %2670 = sbr.rel (%p2668) target = $region36
      $region35: #{conv_forward.2} parent=31 // pred_region
        _
      $region36: #{conv_forward.2} parent=31 // pred_fallthru
        _
      // Predicated region
      $region37: #{conv_forward.2} parent=31 // pred_check
        %p2671 = pneg %p128
      $region38: #{conv_forward.2} parent=31 // pred_check_branch
        %2673 = sbr.rel (%p2671) target = $region40
      $region39: #{conv_forward.2} parent=31 // pred_region
        _
      $region40: #{conv_forward.2} parent=31 // pred_fallthru
        _
    $region32: #{conv_forward.2} parent=5 // pred_fallthru
      _
    %p2674 = scmp.le.s32.totalorder 2, %s11
    // Predicated region
    $region41: #{conv_forward.2} parent=5 // pred_check
      %p2675 = pneg %p2674
    $region42: #{conv_forward.2} parent=5 // pred_check_branch
      %2677 = sbr.rel (%p2675) target = $region44
    $region43: #{conv_forward.2} parent=5 // pred_region
      %s2678 = ssub.s32 %s11, 2
      // Predicated region
      $region45: #{conv_forward.2} parent=43 // pred_check
        %p2679 = pneg %p108
      $region46: #{conv_forward.2} parent=43 // pred_check_branch
        %2681 = sbr.rel (%p2679) target = $region48
      $region47: #{conv_forward.2} parent=43 // pred_region
        %p2682 = scmp.lt.s32.totalorder %s17, 1
        %s2683 = scalar_select %p2682, %s17, 1
        %s2684 = smul.addr %s2683, 32
        %s2685 = smul.addr %s2684, 8
        %s2686 = scalar_lea.vmem %s3, %s2685
      $region48: #{conv_forward.2} parent=43 // pred_fallthru
        _
      // Predicated region
      $region49: #{conv_forward.2} parent=43 // pred_check
        %p2687 = pneg %p134
      $region50: #{conv_forward.2} parent=43 // pred_check_branch
        %2689 = sbr.rel (%p2687) target = $region52
      $region51: #{conv_forward.2} parent=43 // pred_region
        %p2690 = scmp.lt.s32.totalorder %s17, 1
        %s2691 = scalar_select %p2690, %s17, 1
        %s2692 = smul.addr %s2691, 2
        %s2693 = scalar_lea.vmem %s4, %s2692
      $region52: #{conv_forward.2} parent=43 // pred_fallthru
        _
    $region44: #{conv_forward.2} parent=5 // pred_fallthru
      _
  $region6: #{conv_forward.2} parent=0 // loop_footer
    %s15 = sadd.s32 1, %s11
  $region7: #{conv_forward.2} parent=0 // loop_footer_branch
    %10 = sbr.rel target = $region3
  $region8: #{conv_forward.2} parent=0 // loop_exit
    _

</llo_original>
